<compile_context>
chip_gen: v6e
topology: v6e:2x2x1
jax: 0.10.0
libtpu: 0.0.40
codegen_flags: <defaults>
</compile_context>

<pallas_src>
import numpy as np
import jax
import jax.numpy as jnp
from jax import lax
from jax.experimental import pallas as pl
from jax.experimental.pallas import tpu as pltpu


def make_cot_kernel(bb, HW, C, Cr):
    """bb = batches per grid step; per-step lane width N = bb * HW."""

    def kernel(pT_ref, wk_ref, wv_ref, w3_ref, w4_ref, ball_ref, o_ref, y_sc):
        # --- biases (single consolidated operand, f32) -----------------------
        ball = ball_ref[...]                                    # (3C+Cr, 1)
        b1 = ball[:C]
        b2 = ball[C:2 * C]
        b3 = ball[2 * C:2 * C + Cr]
        b4 = ball[2 * C + Cr:]

        # --- key_embed: grouped 3x3 conv (dense block-diag weight) + BN + ReLU
        #     (C, 9C) @ (9C, N) on the MXU, f32 accumulation.
        k1 = jnp.maximum(
            jnp.dot(wk_ref[...], pT_ref[...],
                    preferred_element_type=jnp.float32) + b1, 0.0)       # (C, N)

        # Center-tap rows of the resident patches tile == x itself (bf16).
        x_c = pT_ref[4 * C:5 * C, :]                                     # (C, N)

        # --- value_embed: 1x1 conv + BN — small (C, C) GEMM on the center tap
        v = jnp.dot(wv_ref[...], x_c,
                    preferred_element_type=jnp.float32) + b2             # (C, N)

        # --- attention_embed conv1: stack [k1; x] into a bf16 scratch and run
        #     a single K=2C GEMM (fills the MXU contraction depth).
        y_sc[:C, :] = k1.astype(y_sc.dtype)
        y_sc[C:, :] = x_c
        a1 = jnp.maximum(
            jnp.dot(w3_ref[...], y_sc[...],
                    preferred_element_type=jnp.float32) + b3, 0.0)       # (Cr, N)

        # --- attention_embed conv2 with the k*k mean already folded in -------
        att = jnp.dot(w4_ref[...], a1.astype(w4_ref.dtype),
                      preferred_element_type=jnp.float32) + b4           # (C, N)

        # --- spatial softmax (per batch), scale v, add k1 — all at full lane
        #     width: no sub-vreg slices, no concatenate, one lane-dense store.
        if bb == 1:
            m = jnp.max(att, axis=1, keepdims=True)
            e = jnp.exp(att - m)
            d = jnp.sum(e, axis=1, keepdims=True)
            p = e * pl.reciprocal(d, approx=True)
        else:
            seg = lax.broadcasted_iota(jnp.int32, att.shape, 1) // HW
            m = jnp.zeros_like(att)
            for s in range(bb):                  # static, small unrolled loop
                msk = seg == s
                m_s = jnp.max(jnp.where(msk, att, -jnp.inf), axis=1,
                              keepdims=True)
                m = jnp.where(msk, m_s, m)
            e = jnp.exp(att - m)
            inv = jnp.zeros_like(att)
            for s in range(bb):
                msk = seg == s
                d_s = jnp.sum(jnp.where(msk, e, 0.0), axis=1, keepdims=True)
                inv = jnp.where(msk, pl.reciprocal(d_s, approx=True), inv)
            p = e * inv

        o_ref[...] = (k1 + p * v).astype(o_ref.dtype)                    # (C, N)

    return kernel


def _pick_batches_per_step(bs, HW):
    # Smallest divisor bb of bs with bb*HW a multiple of 128: keeps each step
    # lane-dense (unmasked stores, full MXU lane width) while maximizing the
    # number of parallel grid steps (v7x megacore, DMA/compute pipelining).
    for bb in range(1, bs + 1):
        if bs % bb == 0 and (bb * HW) % 128 == 0:
            return bb
    return bs


def cot_attention_pallas(x_nchw, p):
    bs, C, H, W = x_nchw.shape
    HW = H * W
    Cr = p["w3"].shape[1]
    ksz = 3
    K9 = ksz * ksz * C

    s1, b1 = p["s1"], p["b1"]
    s2, b2 = p["s2"], p["b2"]
    s3, b3 = p["s3"], p["b3"]

    # ---- fold BN scales into weights (exact, inference semantics) -----------
    wk_t = (p["wk_dense"].reshape(K9, C) * s1[None, :]).T.astype(jnp.bfloat16)  # (C, 9C)
    wv_t = (p["w2"] * s2[None, :]).T.astype(jnp.bfloat16)                       # (C, C)
    w3_t = (p["w3"] * s3[None, :]).T.astype(jnp.bfloat16)                       # (Cr, 2C): [:,:C]->k1, [:,C:]->x
    w4_t = p["w4m"].T.astype(jnp.bfloat16)                                      # (C, Cr), k*k mean folded
    ball = jnp.concatenate([b1, b2, b3, p["b4m"]]).reshape(3 * C + Cr, 1)       # f32

    # ---- channel-major im2col: (9C, bs*HW); lanes = batch*spatial -----------
    xpad = jnp.pad(x_nchw, ((0, 0), (0, 0), (1, 1), (1, 1)))
    cols = [xpad[:, :, ky:ky + H, kx:kx + W]
            for ky in range(ksz) for kx in range(ksz)]                   # each (bs,C,H,W)
    pT = jnp.transpose(jnp.stack(cols, axis=0), (0, 2, 1, 3, 4))         # (9,C,bs,H,W)
    patches_t = pT.reshape(K9, bs * HW).astype(jnp.bfloat16)

    bb = _pick_batches_per_step(bs, HW)
    n_step = bb * HW
    grid = (bs // bb,)
    kernel = make_cot_kernel(bb, HW, C, Cr)
    const = lambda shape: pl.BlockSpec(shape, lambda i: (0,) * len(shape))

    # ---- cost estimate & explicit VMEM budget (sized for v7x's 64 MiB) ------
    M = bs * HW
    weight_bytes = 2 * (C * K9 + C * C + Cr * 2 * C + C * Cr) + 4 * (3 * C + Cr)
    flops = 2 * M * (C * K9 + C * C + Cr * 2 * C + C * Cr)
    cost = pl.CostEstimate(flops=flops, transcendentals=M * C,
                           bytes_accessed=2 * K9 * M + 4 * C * M + weight_bytes)
    vmem_est = (2 * 2 * K9 * n_step            # double-buffered bf16 patches tile
                + 2 * 4 * C * n_step           # double-buffered f32 output tile
                + weight_bytes                 # resident bf16 weights + biases
                + 2 * 2 * C * n_step           # bf16 [k1; x] scratch
                + 10 * 4 * C * n_step)         # f32 intermediates headroom
    vmem_limit = int(min(max(2 * vmem_est, 16 << 20), 48 << 20))

    out_t = pl.pallas_call(
        kernel,
        out_shape=jax.ShapeDtypeStruct((C, bs * HW), jnp.float32),
        grid_spec=pltpu.PrefetchScalarGridSpec(
            num_scalar_prefetch=0,
            grid=grid,
            in_specs=[
                pl.BlockSpec((K9, n_step), lambda i: (0, i)),     # patches tile
                const((C, K9)),                                   # key-embed weight
                const((C, C)),                                    # value-embed weight
                const((Cr, 2 * C)),                               # att conv1 weight
                const((C, Cr)),                                   # att conv2 weight (mean-folded)
                const((3 * C + Cr, 1)),                           # all biases
            ],
            out_specs=pl.BlockSpec((C, n_step), lambda i: (0, i)),
            scratch_shapes=[pltpu.VMEM((2 * C, n_step), jnp.bfloat16)]),
        compiler_params=pltpu.CompilerParams(
            dimension_semantics=("parallel",),
            vmem_limit_bytes=vmem_limit),
        cost_estimate=cost,
    )(patches_t, wk_t, wv_t, w3_t, w4_t, ball)

    # (C, bs*HW) -> NCHW to match the PyTorch module's output layout.
    return jnp.transpose(out_t.reshape(C, bs, H, W), (1, 0, 2, 3))


# ---------------------- parameter construction (deterministic) ---------------

def fold_bn(gamma, beta, mean, var, eps=1e-5):
    s = gamma / jnp.sqrt(var + eps)
    return s, beta - mean * s


def init_params(key, dim, groups=4, factor=4, ksize=3):
    C = dim
    Cr = 2 * C // factor
    gsz = C // groups
    ks = jax.random.split(key, 16)

    def bn(k, n):
        k1, k2, k3, k4 = jax.random.split(k, 4)
        gamma = 1.0 + 0.1 * jax.random.normal(k1, (n,), jnp.float32)
        beta = 0.1 * jax.random.normal(k2, (n,), jnp.float32)
        mean = 0.1 * jax.random.normal(k3, (n,), jnp.float32)
        var = jax.random.uniform(k4, (n,), jnp.float32, 0.5, 1.5)
        return fold_bn(gamma, beta, mean, var)

    # key_embed: grouped 3x3 conv (torch weight: (C, C//groups, 3, 3)) + BN
    wk_t = 0.1 * jax.random.normal(ks[0], (C, gsz, ksize, ksize), jnp.float32)
    s1, b1 = bn(ks[1], C)
    # expand grouped weight to dense block-diagonal per-offset matmul weights
    wk_np = np.asarray(wk_t)
    wk_dense = np.zeros((ksize * ksize, C, C), np.float32)
    for ky in range(ksize):
        for kx in range(ksize):
            ki = ky * ksize + kx
            for g in range(groups):
                blk = wk_np[g * gsz:(g + 1) * gsz, :, ky, kx].T   # (in_g, out_g)
                wk_dense[ki, g * gsz:(g + 1) * gsz, g * gsz:(g + 1) * gsz] = blk

    # value_embed: 1x1 conv (C->C) + BN
    w2_t = 0.1 * jax.random.normal(ks[2], (C, C), jnp.float32)    # (out, in)
    s2, b2 = bn(ks[3], C)

    # attention_embed: 1x1 conv (2C->Cr) + BN + ReLU, 1x1 conv (Cr->9C, bias)
    w3_t = 0.1 * jax.random.normal(ks[4], (Cr, 2 * C), jnp.float32)
    s3, b3 = bn(ks[5], Cr)
    w4_t = 0.1 * jax.random.normal(ks[6], (ksize * ksize * C, Cr), jnp.float32)
    bias4 = 0.1 * jax.random.normal(ks[7], (ksize * ksize * C,), jnp.float32)

    w4_full = w4_t.T                                              # (Cr, 9C)
    w4m = w4_full.reshape(Cr, C, ksize * ksize).mean(-1)          # kxk-mean fold
    b4m = bias4.reshape(C, ksize * ksize).mean(-1)

    return dict(
        wk_torch=wk_t, wk_dense=jnp.asarray(wk_dense), s1=s1, b1=b1,
        w2=w2_t.T, s2=s2, b2=b2,
        w3=w3_t.T, s3=s3, b3=b3,
        w4_full=w4_full, bias4=bias4, w4m=w4m, b4m=b4m,
    )


# ---------------------- pure-JAX reference (PyTorch semantics) ---------------

def reference(x_nchw, p):
    bs, C, H, W = x_nchw.shape
    k1 = jax.lax.conv_general_dilated(
        x_nchw, p["wk_torch"], (1, 1), "SAME", feature_group_count=4,
        dimension_numbers=("NCHW", "OIHW", "NCHW"))
    k1 = jnp.maximum(k1 * p["s1"][None, :, None, None] + p["b1"][None, :, None, None], 0.0)
    v = jnp.einsum("bchw,cd->bdhw", x_nchw, p["w2"])
    v = (v * p["s2"][None, :, None, None] + p["b2"][None, :, None, None]).reshape(bs, C, H * W)
    y = jnp.concatenate([k1, x_nchw], axis=1)
    a1 = jnp.einsum("bchw,cd->bdhw", y, p["w3"])
    a1 = jnp.maximum(a1 * p["s3"][None, :, None, None] + p["b3"][None, :, None, None], 0.0)
    att = jnp.einsum("bchw,cd->bdhw", a1, p["w4_full"]) + p["bias4"][None, :, None, None]
    att = att.reshape(bs, C, 9, H, W).mean(2).reshape(bs, C, H * W)
    k2 = (jax.nn.softmax(att, axis=-1) * v).reshape(bs, C, H, W)
    return k1 + k2


if __name__ == "__main__":
    bs, dim, H, W = 2, 64, 16, 16   # dim must be divisible by groups=4
    key = jax.random.PRNGKey(0)
    kx, kp = jax.random.split(key)
    x = jax.random.normal(kx, (bs, dim, H, W), jnp.float32)   # NCHW, like PyTorch
    params = init_params(kp, dim)

    out = jax.block_until_ready(cot_attention_pallas(x, params))
    ref = jax.block_until_ready(reference(x, params))

    assert out.shape == (bs, dim, H, W)
    # bf16 matmul operands (f32 accumulation) + approx reciprocal -> widened tol.
    np.testing.assert_allclose(np.asarray(out), np.asarray(ref), atol=3e-2, rtol=3e-2)
    print("KERNEL_OK")
</pallas_src>

<mosaic_0001>
module attributes {stable_mosaic.version = 11 : i64} {
  func.func @kernel(%arg0: i32, %arg1: memref<576x256xbf16, #tpu.memory_space<vmem>>, %arg2: memref<64x576xbf16, #tpu.memory_space<vmem>>, %arg3: memref<64x64xbf16, #tpu.memory_space<vmem>>, %arg4: memref<32x128xbf16, #tpu.memory_space<vmem>>, %arg5: memref<64x32xbf16, #tpu.memory_space<vmem>>, %arg6: memref<224x1xf32, #tpu.memory_space<vmem>>, %arg7: memref<64x256xf32, #tpu.memory_space<vmem>>, %arg8: memref<128x256xbf16, #tpu.memory_space<vmem>>) attributes {dimension_semantics = [#tpu.dimension_semantics<parallel>], iteration_bounds = array<i64: 2>, scalar_prefetch = 0 : i64, scratch_operands = 1 : i64, tpu.core_type = #tpu.core_type<tc>, window_params = [{transform_indices = @transform_0, window_bounds = array<i64: 576, 256>}, {pipeline_mode = #tpu.pipeline_mode<synchronous>, transform_indices = @transform_1, window_bounds = array<i64: 64, 576>}, {pipeline_mode = #tpu.pipeline_mode<synchronous>, transform_indices = @transform_2, window_bounds = array<i64: 64, 64>}, {pipeline_mode = #tpu.pipeline_mode<synchronous>, transform_indices = @transform_3, window_bounds = array<i64: 32, 128>}, {pipeline_mode = #tpu.pipeline_mode<synchronous>, transform_indices = @transform_4, window_bounds = array<i64: 64, 32>}, {pipeline_mode = #tpu.pipeline_mode<synchronous>, transform_indices = @transform_5, window_bounds = array<i64: 224, 1>}, {transform_indices = @transform_6, window_bounds = array<i64: 64, 256>}]} {
    %c0 = arith.constant 0 : index
    %c0_0 = arith.constant 0 : index
    %0 = vector.load %arg6[%c0, %c0_0] : memref<224x1xf32, #tpu.memory_space<vmem>>, vector<224x1xf32>
    %1 = vector.extract_strided_slice %0 {offsets = [0, 0], sizes = [64, 1], strides = [1, 1]} : vector<224x1xf32> to vector<64x1xf32>
    %2 = vector.extract_strided_slice %0 {offsets = [64, 0], sizes = [64, 1], strides = [1, 1]} : vector<224x1xf32> to vector<64x1xf32>
    %3 = vector.extract_strided_slice %0 {offsets = [128, 0], sizes = [32, 1], strides = [1, 1]} : vector<224x1xf32> to vector<32x1xf32>
    %4 = vector.extract_strided_slice %0 {offsets = [160, 0], sizes = [64, 1], strides = [1, 1]} : vector<224x1xf32> to vector<64x1xf32>
    %c0_1 = arith.constant 0 : index
    %c0_2 = arith.constant 0 : index
    %5 = vector.load %arg2[%c0_1, %c0_2] : memref<64x576xbf16, #tpu.memory_space<vmem>>, vector<64x576xbf16>
    %c0_3 = arith.constant 0 : index
    %c0_4 = arith.constant 0 : index
    %6 = vector.load %arg1[%c0_3, %c0_4] : memref<576x256xbf16, #tpu.memory_space<vmem>>, vector<576x256xbf16>
    %cst = arith.constant dense<0.000000e+00> : vector<64x256xf32>
    %7 = tpu.matmul %5, %6, %cst {dimension_numbers = #tpu.dot_dimension_numbers<[1], [0], [0], [1], [0, 0, 1, 1], [], []>} : vector<64x576xbf16>, vector<576x256xbf16>, vector<64x256xf32> -> vector<64x256xf32>
    %8 = vector.broadcast %1 : vector<64x1xf32> to vector<64x256xf32>
    %9 = arith.addf %7, %8 : vector<64x256xf32>
    %cst_5 = arith.constant 0.000000e+00 : f32
    %10 = vector.broadcast %cst_5 : f32 to vector<64x256xf32>
    %11 = arith.maximumf %9, %10 : vector<64x256xf32>
    %c256 = arith.constant 256 : index
    %c0_6 = arith.constant 0 : index
    %12 = vector.load %arg1[%c256, %c0_6] : memref<576x256xbf16, #tpu.memory_space<vmem>>, vector<64x256xbf16>
    %c0_7 = arith.constant 0 : index
    %c0_8 = arith.constant 0 : index
    %13 = vector.load %arg3[%c0_7, %c0_8] : memref<64x64xbf16, #tpu.memory_space<vmem>>, vector<64x64xbf16>
    %cst_9 = arith.constant dense<0.000000e+00> : vector<64x256xf32>
    %14 = tpu.matmul %13, %12, %cst_9 {dimension_numbers = #tpu.dot_dimension_numbers<[1], [0], [0], [1], [0, 0, 1, 1], [], []>} : vector<64x64xbf16>, vector<64x256xbf16>, vector<64x256xf32> -> vector<64x256xf32>
    %15 = vector.broadcast %2 : vector<64x1xf32> to vector<64x256xf32>
    %16 = arith.addf %14, %15 : vector<64x256xf32>
    %17 = arith.truncf %11 : vector<64x256xf32> to vector<64x256xbf16>
    %c0_10 = arith.constant 0 : index
    %c0_11 = arith.constant 0 : index
    %18 = vector.load %arg8[%c0_10, %c0_11] : memref<128x256xbf16, #tpu.memory_space<vmem>>, vector<64x256xbf16>
    tpu.vector_store %arg8[%c0_10, %c0_11], %17 {strides = array<i32>} : memref<128x256xbf16, #tpu.memory_space<vmem>>, vector<64x256xbf16>,
    %c64 = arith.constant 64 : index
    %c0_12 = arith.constant 0 : index
    %19 = vector.load %arg8[%c64, %c0_12] : memref<128x256xbf16, #tpu.memory_space<vmem>>, vector<64x256xbf16>
    tpu.vector_store %arg8[%c64, %c0_12], %12 {strides = array<i32>} : memref<128x256xbf16, #tpu.memory_space<vmem>>, vector<64x256xbf16>,
    %c0_13 = arith.constant 0 : index
    %c0_14 = arith.constant 0 : index
    %20 = vector.load %arg4[%c0_13, %c0_14] : memref<32x128xbf16, #tpu.memory_space<vmem>>, vector<32x128xbf16>
    %c0_15 = arith.constant 0 : index
    %c0_16 = arith.constant 0 : index
    %21 = vector.load %arg8[%c0_15, %c0_16] : memref<128x256xbf16, #tpu.memory_space<vmem>>, vector<128x256xbf16>
    %cst_17 = arith.constant dense<0.000000e+00> : vector<32x256xf32>
    %22 = tpu.matmul %20, %21, %cst_17 {dimension_numbers = #tpu.dot_dimension_numbers<[1], [0], [0], [1], [0, 0, 1, 1], [], []>} : vector<32x128xbf16>, vector<128x256xbf16>, vector<32x256xf32> -> vector<32x256xf32>
    %23 = vector.broadcast %3 : vector<32x1xf32> to vector<32x256xf32>
    %24 = arith.addf %22, %23 : vector<32x256xf32>
    %cst_18 = arith.constant 0.000000e+00 : f32
    %25 = vector.broadcast %cst_18 : f32 to vector<32x256xf32>
    %26 = arith.maximumf %24, %25 : vector<32x256xf32>
    %c0_19 = arith.constant 0 : index
    %c0_20 = arith.constant 0 : index
    %27 = vector.load %arg5[%c0_19, %c0_20] : memref<64x32xbf16, #tpu.memory_space<vmem>>, vector<64x32xbf16>
    %28 = arith.truncf %26 : vector<32x256xf32> to vector<32x256xbf16>
    %cst_21 = arith.constant dense<0.000000e+00> : vector<64x256xf32>
    %29 = tpu.matmul %27, %28, %cst_21 {dimension_numbers = #tpu.dot_dimension_numbers<[1], [0], [0], [1], [0, 0, 1, 1], [], []>} : vector<64x32xbf16>, vector<32x256xbf16>, vector<64x256xf32> -> vector<64x256xf32>
    %30 = vector.broadcast %4 : vector<64x1xf32> to vector<64x256xf32>
    %31 = arith.addf %29, %30 : vector<64x256xf32>
    %cst_22 = arith.constant dense<0xFF800000> : vector<64xf32>
    %32 = vector.multi_reduction <maximumf>, %31, %cst_22 [1] : vector<64x256xf32> to vector<64xf32>
    %33 = vector.shape_cast %32 : vector<64xf32> to vector<64x1xf32>
    %34 = vector.broadcast %33 : vector<64x1xf32> to vector<64x256xf32>
    %35 = arith.subf %31, %34 : vector<64x256xf32>
    %36 = math.exp %35 : vector<64x256xf32>
    %cst_23 = arith.constant dense<0.000000e+00> : vector<64xf32>
    %37 = vector.multi_reduction <add>, %36, %cst_23 [1] : vector<64x256xf32> to vector<64xf32>
    %38 = vector.shape_cast %37 : vector<64xf32> to vector<64x1xf32>
    %39 = tpu.reciprocal %38 {approx = true} : vector<64x1xf32> -> vector<64x1xf32>
    %40 = vector.broadcast %39 : vector<64x1xf32> to vector<64x256xf32>
    %41 = arith.mulf %36, %40 : vector<64x256xf32>
    %42 = arith.mulf %41, %16 : vector<64x256xf32>
    %43 = arith.addf %11, %42 : vector<64x256xf32>
    %c0_24 = arith.constant 0 : index
    %c0_25 = arith.constant 0 : index
    %44 = vector.load %arg7[%c0_24, %c0_25] : memref<64x256xf32, #tpu.memory_space<vmem>>, vector<64x256xf32>
    tpu.vector_store %arg7[%c0_24, %c0_25], %43 {strides = array<i32>} : memref<64x256xf32, #tpu.memory_space<vmem>>, vector<64x256xf32>,
    return
  }
  func.func @transform_0(%arg0: i32) -> (i32, i32) {
    %c0_i32 = arith.constant 0 : i32
    %c0_i32_0 = arith.constant 0 : i32
    return %c0_i32, %arg0 : i32, i32
  }
  func.func @transform_1(%arg0: i32) -> (i32, i32) {
    %c0_i32 = arith.constant 0 : i32
    %c0_i32_0 = arith.constant 0 : i32
    %c0_i32_1 = arith.constant 0 : i32
    return %c0_i32, %c0_i32_0 : i32, i32
  }
  func.func @transform_2(%arg0: i32) -> (i32, i32) {
    %c0_i32 = arith.constant 0 : i32
    %c0_i32_0 = arith.constant 0 : i32
    %c0_i32_1 = arith.constant 0 : i32
    return %c0_i32, %c0_i32_0 : i32, i32
  }
  func.func @transform_3(%arg0: i32) -> (i32, i32) {
    %c0_i32 = arith.constant 0 : i32
    %c0_i32_0 = arith.constant 0 : i32
    %c0_i32_1 = arith.constant 0 : i32
    return %c0_i32, %c0_i32_0 : i32, i32
  }
  func.func @transform_4(%arg0: i32) -> (i32, i32) {
    %c0_i32 = arith.constant 0 : i32
    %c0_i32_0 = arith.constant 0 : i32
    %c0_i32_1 = arith.constant 0 : i32
    return %c0_i32, %c0_i32_0 : i32, i32
  }
  func.func @transform_5(%arg0: i32) -> (i32, i32) {
    %c0_i32 = arith.constant 0 : i32
    %c0_i32_0 = arith.constant 0 : i32
    %c0_i32_1 = arith.constant 0 : i32
    return %c0_i32, %c0_i32_0 : i32, i32
  }
  func.func @transform_6(%arg0: i32) -> (i32, i32) {
    %c0_i32 = arith.constant 0 : i32
    %c0_i32_0 = arith.constant 0 : i32
    return %c0_i32, %arg0 : i32, i32
  }
}

</mosaic_0001>

<llo_original>
// kernel: tpu_custom_call.1
$region0: #{tpu_custom_call.1}
  #allocation0 [shape = 'u32[]', space=smem, size = 0x4, offset = 0x4, fixed_abs, tag = 'smem constant byte address 0x4 - core index']
  #allocation1 [shape = 'u32[144,128]{1,0:T(1,128)}', space=vmem, size = 0x12000, scoped, tag = 'internal scratch']
  #allocation2 [shape = 'bf16[128,256]{1,0:T(8,128)(2,1)}', space=vmem, size = 0x10000, scoped, tag = 'scratch operand']
  %s0 = inlined_call_operand.hbm [shape: bf16[576,512], index: 0, kind: input, shape index: {}]
  %s1 = inlined_call_operand.vmem [shape: bf16[64,576], index: 1, kind: input, shape index: {}]
  %s2 = inlined_call_operand.vmem [shape: bf16[64,64], index: 2, kind: input, shape index: {}]
  %s3 = inlined_call_operand.vmem [shape: bf16[32,128], index: 3, kind: input, shape index: {}]
  %s4 = inlined_call_operand.vmem [shape: bf16[64,32], index: 4, kind: input, shape index: {}]
  %s5 = inlined_call_operand.vmem [shape: f32[224,1], index: 5, kind: input, shape index: {}]
  %s6 = inlined_call_operand.hbm [shape: f32[64,512], index: 6, kind: output, shape index: {}]
  %s7 = sld [smem:[#allocation0]]
  $region61: #{tpu_custom_call.1} parent=0
    _
  %s9 = ssub.s32 1, %s7
  %s10 = scalar_select 0, %s9, %s7
  $region1: #{tpu_custom_call.1} parent=0
    #allocation3 [shape = 'u8[589824]{0}', space=vmem, size = 0x90000, scoped, tag = 'input window, operand 0']
    #allocation4 [shape = 's32[2]{0}', space=sflag, size = 0x8, scoped, tag = 'scoped memory for tpu_custom_call.1']
    #allocation5 [shape = 's32[2]{0}', space=sflag, size = 0x8, scoped, tag = 'scoped memory for tpu_custom_call.1']
    #allocation6 [shape = 'u8[131072]{0}', space=vmem, size = 0x20000, scoped, tag = 'output window, operand 0']
    %11 = vsyncpa [#allocation4], 0
    %s12 = scalar_lea.sflag [#allocation4], 1
    %13 = vsyncpa %s12, 0
    %14 = vsyncpa [#allocation5], 0
    %s15 = scalar_lea.sflag [#allocation5], 1
    %16 = vsyncpa %s15, 0
    loop: start=0, step=1, limit=4
    $region2: #{tpu_custom_call.1} parent=1 // loop_pre_header
      _
    $region3: #{tpu_custom_call.1} parent=1 // loop_header
      %s18 = sphi 0, %s22
      %p19 = scmp.ge.s32.totalorder %s18, 4
      %s28 = sphi 0, %s30
      %s31 = sphi 0, %s28
      %s32 = sphi 0, %s31
      %s48 = sphi 0, %s32
      %s52 = sphi 0, %s52
      %s54 = sphi 0, %s52
      %s55 = sphi 0, %s54
      %s69 = sphi 0, %s55
      %s73 = sphi 0, %s73
      %s75 = sphi 0, %s73
      %s76 = sphi 0, %s75
      %s90 = sphi 0, %s76
      %s94 = sphi 0, %s94
      %s96 = sphi 0, %s94
      %s97 = sphi 0, %s96
      %s111 = sphi 0, %s97
      %s115 = sphi 0, %s115
      %s117 = sphi 0, %s115
      %s118 = sphi 0, %s117
      %s132 = sphi 0, %s118
      %s136 = sphi 0, %s136
      %s138 = sphi 0, %s136
      %s139 = sphi 0, %s138
      %s153 = sphi 0, %s139
      %s159 = sphi 0, %s161
      %s162 = sphi 0, %s159
      %s163 = sphi 0, %s162
      %s179 = sphi 0, %s163
    $region4: #{tpu_custom_call.1} parent=1 // loop_header_branch
      %21 = sbr.rel (%p19) target = $region8
    $region5: #{tpu_custom_call.1} parent=1 // loop_body
      %s23 = ssub.s32 %s18, 1
      %s24 = ssub.s32 %s18, 2
      %s25 = sadd.s32 %s18, 1
      %s26 = ssub.s32 %s18, %s25
      %p27 = scmp.eq.s32.totalorder %s26, 0
      %s29 = sadd.s32 %s28, 1
      %s30 = scalar_select %p27, %s28, %s29
      %p33 = pneg %p27
      %p34 = scmp.eq.s32.totalorder %s18, 1
      %p35 = por %p33, %p34
      %p36 = scmp.ne.s32.totalorder %s28, %s31
      %p37 = scmp.eq.s32.totalorder %s18, 0
      %p38 = por %p36, %p37
      %p39 = scmp.ne.s32.totalorder %s28, %s31
      %p40 = scmp.eq.s32.totalorder %s23, 1
      %p41 = por %p39, %p40
      %p42 = scmp.ne.s32.totalorder %s31, %s32
      %p43 = scmp.eq.s32.totalorder %s23, 0
      %p44 = por %p42, %p43
      %p45 = scmp.ne.s32.totalorder %s31, %s32
      %p46 = scmp.eq.s32.totalorder %s24, 1
      %p47 = por %p45, %p46
      %p49 = scmp.ne.s32.totalorder %s32, %s48
      %p50 = scmp.eq.s32.totalorder %s24, 0
      %p51 = por %p49, %p50
      %s53 = sadd.s32 %s52, 1
      %p56 = scmp.eq.s32.totalorder %s18, 1
      %p57 = scmp.ne.s32.totalorder %s52, %s54
      %p58 = scmp.eq.s32.totalorder %s18, 0
      %p59 = por %p57, %p58
      %p60 = scmp.ne.s32.totalorder %s52, %s54
      %p61 = scmp.eq.s32.totalorder %s23, 1
      %p62 = por %p60, %p61
      %p63 = scmp.ne.s32.totalorder %s54, %s55
      %p64 = scmp.eq.s32.totalorder %s23, 0
      %p65 = por %p63, %p64
      %p66 = scmp.ne.s32.totalorder %s54, %s55
      %p67 = scmp.eq.s32.totalorder %s24, 1
      %p68 = por %p66, %p67
      %p70 = scmp.ne.s32.totalorder %s55, %s69
      %p71 = scmp.eq.s32.totalorder %s24, 0
      %p72 = por %p70, %p71
      %s74 = sadd.s32 %s73, 1
      %p77 = scmp.eq.s32.totalorder %s18, 1
      %p78 = scmp.ne.s32.totalorder %s73, %s75
      %p79 = scmp.eq.s32.totalorder %s18, 0
      %p80 = por %p78, %p79
      %p81 = scmp.ne.s32.totalorder %s73, %s75
      %p82 = scmp.eq.s32.totalorder %s23, 1
      %p83 = por %p81, %p82
      %p84 = scmp.ne.s32.totalorder %s75, %s76
      %p85 = scmp.eq.s32.totalorder %s23, 0
      %p86 = por %p84, %p85
      %p87 = scmp.ne.s32.totalorder %s75, %s76
      %p88 = scmp.eq.s32.totalorder %s24, 1
      %p89 = por %p87, %p88
      %p91 = scmp.ne.s32.totalorder %s76, %s90
      %p92 = scmp.eq.s32.totalorder %s24, 0
      %p93 = por %p91, %p92
      %s95 = sadd.s32 %s94, 1
      %p98 = scmp.eq.s32.totalorder %s18, 1
      %p99 = scmp.ne.s32.totalorder %s94, %s96
      %p100 = scmp.eq.s32.totalorder %s18, 0
      %p101 = por %p99, %p100
      %p102 = scmp.ne.s32.totalorder %s94, %s96
      %p103 = scmp.eq.s32.totalorder %s23, 1
      %p104 = por %p102, %p103
      %p105 = scmp.ne.s32.totalorder %s96, %s97
      %p106 = scmp.eq.s32.totalorder %s23, 0
      %p107 = por %p105, %p106
      %p108 = scmp.ne.s32.totalorder %s96, %s97
      %p109 = scmp.eq.s32.totalorder %s24, 1
      %p110 = por %p108, %p109
      %p112 = scmp.ne.s32.totalorder %s97, %s111
      %p113 = scmp.eq.s32.totalorder %s24, 0
      %p114 = por %p112, %p113
      %s116 = sadd.s32 %s115, 1
      %p119 = scmp.eq.s32.totalorder %s18, 1
      %p120 = scmp.ne.s32.totalorder %s115, %s117
      %p121 = scmp.eq.s32.totalorder %s18, 0
      %p122 = por %p120, %p121
      %p123 = scmp.ne.s32.totalorder %s115, %s117
      %p124 = scmp.eq.s32.totalorder %s23, 1
      %p125 = por %p123, %p124
      %p126 = scmp.ne.s32.totalorder %s117, %s118
      %p127 = scmp.eq.s32.totalorder %s23, 0
      %p128 = por %p126, %p127
      %p129 = scmp.ne.s32.totalorder %s117, %s118
      %p130 = scmp.eq.s32.totalorder %s24, 1
      %p131 = por %p129, %p130
      %p133 = scmp.ne.s32.totalorder %s118, %s132
      %p134 = scmp.eq.s32.totalorder %s24, 0
      %p135 = por %p133, %p134
      %s137 = sadd.s32 %s136, 1
      %p140 = scmp.eq.s32.totalorder %s18, 1
      %p141 = scmp.ne.s32.totalorder %s136, %s138
      %p142 = scmp.eq.s32.totalorder %s18, 0
      %p143 = por %p141, %p142
      %p144 = scmp.ne.s32.totalorder %s136, %s138
      %p145 = scmp.eq.s32.totalorder %s23, 1
      %p146 = por %p144, %p145
      %p147 = scmp.ne.s32.totalorder %s138, %s139
      %p148 = scmp.eq.s32.totalorder %s23, 0
      %p149 = por %p147, %p148
      %p150 = scmp.ne.s32.totalorder %s138, %s139
      %p151 = scmp.eq.s32.totalorder %s24, 1
      %p152 = por %p150, %p151
      %p154 = scmp.ne.s32.totalorder %s139, %s153
      %p155 = scmp.eq.s32.totalorder %s24, 0
      %p156 = por %p154, %p155
      %s157 = ssub.s32 %s18, %s25
      %p158 = scmp.eq.s32.totalorder %s157, 0
      %s160 = sadd.s32 %s159, 1
      %s161 = scalar_select %p158, %s159, %s160
      %p164 = pneg %p158
      %p165 = scmp.eq.s32.totalorder %s18, 1
      %p166 = por %p164, %p165
      %p167 = scmp.ne.s32.totalorder %s159, %s162
      %p168 = scmp.eq.s32.totalorder %s18, 0
      %p169 = por %p167, %p168
      %p170 = scmp.ne.s32.totalorder %s159, %s162
      %p171 = scmp.eq.s32.totalorder %s23, 1
      %p172 = por %p170, %p171
      %p173 = scmp.ne.s32.totalorder %s162, %s163
      %p174 = scmp.eq.s32.totalorder %s23, 0
      %p175 = por %p173, %p174
      %p176 = scmp.ne.s32.totalorder %s162, %s163
      %p177 = scmp.eq.s32.totalorder %s24, 1
      %p178 = por %p176, %p177
      %p180 = scmp.ne.s32.totalorder %s163, %s179
      %p181 = scmp.eq.s32.totalorder %s24, 0
      %p182 = por %p180, %p181
      %p183 = scmp.le.s32.totalorder 1, %s18
      %p184 = scmp.lt.s32.totalorder %s18, 3
      %p185 = pnand %p183, %p184
      %p186 = pneg %p185
      // Predicated region
      $region9: #{tpu_custom_call.1} parent=5 // pred_check
        _
      $region10: #{tpu_custom_call.1} parent=5 // pred_check_branch
        %188 = sbr.rel (%p185) target = $region12
      $region11: #{tpu_custom_call.1} parent=5 // pred_region
        %s189 = ssub.s32 %s18, 1
        // Predicated region
        $region13: #{tpu_custom_call.1} parent=11 // pred_check
          %p190 = pneg %p65
        $region14: #{tpu_custom_call.1} parent=11 // pred_check_branch
          %192 = sbr.rel (%p190) target = $region16
        $region15: #{tpu_custom_call.1} parent=11 // pred_region
          _
        $region16: #{tpu_custom_call.1} parent=11 // pred_fallthru
          _
        // Predicated region
        $region17: #{tpu_custom_call.1} parent=11 // pred_check
          %p193 = pneg %p86
        $region18: #{tpu_custom_call.1} parent=11 // pred_check_branch
          %195 = sbr.rel (%p193) target = $region20
        $region19: #{tpu_custom_call.1} parent=11 // pred_region
          _
        $region20: #{tpu_custom_call.1} parent=11 // pred_fallthru
          _
        // Predicated region
        $region21: #{tpu_custom_call.1} parent=11 // pred_check
          %p196 = pneg %p107
        $region22: #{tpu_custom_call.1} parent=11 // pred_check_branch
          %198 = sbr.rel (%p196) target = $region24
        $region23: #{tpu_custom_call.1} parent=11 // pred_region
          _
        $region24: #{tpu_custom_call.1} parent=11 // pred_fallthru
          _
        // Predicated region
        $region25: #{tpu_custom_call.1} parent=11 // pred_check
          %p199 = pneg %p128
        $region26: #{tpu_custom_call.1} parent=11 // pred_check_branch
          %201 = sbr.rel (%p199) target = $region28
        $region27: #{tpu_custom_call.1} parent=11 // pred_region
          _
        $region28: #{tpu_custom_call.1} parent=11 // pred_fallthru
          _
        // Predicated region
        $region29: #{tpu_custom_call.1} parent=11 // pred_check
          %p202 = pneg %p149
        $region30: #{tpu_custom_call.1} parent=11 // pred_check_branch
          %204 = sbr.rel (%p202) target = $region32
        $region31: #{tpu_custom_call.1} parent=11 // pred_region
          _
        $region32: #{tpu_custom_call.1} parent=11 // pred_fallthru
          _
      $region12: #{tpu_custom_call.1} parent=5 // pred_fallthru
        _
      %p205 = scmp.lt.s32.totalorder %s18, 2
      // Predicated region
      $region33: #{tpu_custom_call.1} parent=5 // pred_check
        %p206 = pneg %p205
      $region34: #{tpu_custom_call.1} parent=5 // pred_check_branch
        %208 = sbr.rel (%p206) target = $region36
      $region35: #{tpu_custom_call.1} parent=5 // pred_region
        // Predicated region
        $region37: #{tpu_custom_call.1} parent=35 // pred_check
          %p209 = pneg %p38
        $region38: #{tpu_custom_call.1} parent=35 // pred_check_branch
          %211 = sbr.rel (%p209) target = $region40
        $region39: #{tpu_custom_call.1} parent=35 // pred_region
          %s212 = sand.u32 %s28, 1
          %s213 = scalar_lea.sflag [#allocation4], %s212
          %s214 = sand.u32 %s28, 1
          %s215 = smul.addr %s214, 576
          %s216 = scalar_lea.vmem [#allocation3], %s215
          %s217 = smul.u32 2, %s18
          %s219 = ssub.s32 9216, 9216
          %220 = vsyncadd %s213, %s219
          %s221 = smul.addr %s217, 64
          %s222 = scalar_lea.hbm %s0, %s221
          %s223 = sshll.u32 %s216, 4
          %s224 = int_to_ptr.vmem [resolvable:$true] %s223
          %229 = dma.hbm_to_vmem [thread:$0]  %s222, 9216, %s224, %s213, 256, 128, 8
        $region40: #{tpu_custom_call.1} parent=35 // pred_fallthru
          _
      $region36: #{tpu_custom_call.1} parent=5 // pred_fallthru
        _
      %p230 = scmp.le.s32.totalorder 1, %s18
      %p231 = scmp.lt.s32.totalorder %s18, 3
      %p232 = pnand %p230, %p231
      %p233 = pneg %p232
      // Predicated region
      $region41: #{tpu_custom_call.1} parent=5 // pred_check
        _
      $region42: #{tpu_custom_call.1} parent=5 // pred_check_branch
        %235 = sbr.rel (%p232) target = $region44
      $region43: #{tpu_custom_call.1} parent=5 // pred_region
        %s236 = ssub.s32 %s18, 1
        %s237 = sand.u32 %s31, 1
        %s238 = scalar_lea.sflag [#allocation4], %s237
        %s239 = sand.u32 %s31, 1
        %s240 = smul.addr %s239, 576
        %s241 = scalar_lea.vmem [#allocation3], %s240
        // Predicated region
        $region45: #{tpu_custom_call.1} parent=43 // pred_check
          %p242 = pneg %p44
        $region46: #{tpu_custom_call.1} parent=43 // pred_check_branch
          %244 = sbr.rel (%p242) target = $region48
        $region47: #{tpu_custom_call.1} parent=43 // pred_region
          %245 = dma.done %s238, 9216
        $region48: #{tpu_custom_call.1} parent=43 // pred_fallthru
          _
        %s246 = sand.u32 %s31, 1
        %s247 = scalar_lea.sflag [#allocation4], %s246
        %s248 = sand.u32 %s31, 1
        %s249 = smul.addr %s248, 576
        %s250 = scalar_lea.vmem [#allocation3], %s249
        %p251 = pneg %p44
        %p252 = pneg %p41
        %p253 = pneg %p65
        %p254 = pneg %p62
        %p255 = pneg %p86
        %p256 = pneg %p83
        %p257 = pneg %p107
        %p258 = pneg %p104
        %p259 = pneg %p128
        %p260 = pneg %p125
        %p261 = pneg %p149
        %p262 = pneg %p146
        %p263 = pneg %p175
        %p264 = pneg %p172
        %s265 = sand.u32 %s162, 1
        %s266 = scalar_lea.sflag [#allocation5], %s265
        %s267 = sand.u32 %s162, 1
        %s268 = smul.addr %s267, 128
        %s269 = scalar_lea.vmem [#allocation6], %s268
        %s270 = smul.u32 2, %s23
        %s271 = smul.u32 2, %s23
        %v273 = vld [vmem:[%s5] sm:$0xff]
        %v274 = vld [vmem:[%s5 + $0x8] sm:$0xff]
        %v275 = vld [vmem:[%s5 + $0x10] sm:$0xff]
        %v276 = vld [vmem:[%s5 + $0x18] sm:$0xff]
        %v277 = vld [vmem:[%s5 + $0x20] sm:$0xff]
        %v278 = vld [vmem:[%s5 + $0x28] sm:$0xff]
        %v279 = vld [vmem:[%s5 + $0x30] sm:$0xff]
        %v280 = vld [vmem:[%s5 + $0x38] sm:$0xff]
        %v281 = vld [vmem:[%s5 + $0x40] sm:$0xff]
        %v282 = vld [vmem:[%s5 + $0x48] sm:$0xff]
        %v283 = vld [vmem:[%s5 + $0x50] sm:$0xff]
        %v284 = vld [vmem:[%s5 + $0x58] sm:$0xff]
        %v285 = vld [vmem:[%s5 + $0x60] sm:$0xff]
        %v286 = vld [vmem:[%s5 + $0x68] sm:$0xff]
        %v287 = vld [vmem:[%s5 + $0x70] sm:$0xff]
        %v288 = vld [vmem:[%s5 + $0x78] sm:$0xff]
        %v289 = vld [vmem:[%s5 + $0x80] sm:$0xff]
        %v290 = vld [vmem:[%s5 + $0x88] sm:$0xff]
        %v291 = vld [vmem:[%s5 + $0x90] sm:$0xff]
        %v292 = vld [vmem:[%s5 + $0x98] sm:$0xff]
        %v293 = vld [vmem:[%s5 + $0xa0] sm:$0xff]
        %v294 = vld [vmem:[%s5 + $0xa8] sm:$0xff]
        %v295 = vld [vmem:[%s5 + $0xb0] sm:$0xff]
        %v296 = vld [vmem:[%s5 + $0xb8] sm:$0xff]
        %v297 = vld [vmem:[%s5 + $0xc0] sm:$0xff]
        %v298 = vld [vmem:[%s5 + $0xc8] sm:$0xff]
        %v299 = vld [vmem:[%s5 + $0xd0] sm:$0xff]
        %v300 = vld [vmem:[%s5 + $0xd8] sm:$0xff]
        %v301 = vld [vmem:[%s1] sm:$0xff]
        %v302 = vld [vmem:[%s1 + $0x8] sm:$0xff]
        %v303 = vld [vmem:[%s1 + $0x10] sm:$0xf]
        %v304 = vld [vmem:[%s1 + $0x14] sm:$0xff]
        %v305 = vld [vmem:[%s1 + $0x1c] sm:$0xff]
        %v306 = vld [vmem:[%s1 + $0x24] sm:$0xf]
        %v307 = vld [vmem:[%s1 + $0x28] sm:$0xff]
        %v308 = vld [vmem:[%s1 + $0x30] sm:$0xff]
        %v309 = vld [vmem:[%s1 + $0x38] sm:$0xf]
        %v310 = vld [vmem:[%s1 + $0x3c] sm:$0xff]
        %v311 = vld [vmem:[%s1 + $0x44] sm:$0xff]
        %v312 = vld [vmem:[%s1 + $0x4c] sm:$0xf]
        %v313 = vld [vmem:[%s1 + $0x50] sm:$0xff]
        %v314 = vld [vmem:[%s1 + $0x58] sm:$0xff]
        %v315 = vld [vmem:[%s1 + $0x60] sm:$0xf]
        %v316 = vld [vmem:[%s1 + $0x64] sm:$0xff]
        %v317 = vld [vmem:[%s1 + $0x6c] sm:$0xff]
        %v318 = vld [vmem:[%s1 + $0x74] sm:$0xf]
        %v319 = vld [vmem:[%s1 + $0x78] sm:$0xff]
        %v320 = vld [vmem:[%s1 + $0x80] sm:$0xff]
        %v321 = vld [vmem:[%s1 + $0x88] sm:$0xf]
        %v322 = vld [vmem:[%s1 + $0x8c] sm:$0xff]
        %v323 = vld [vmem:[%s1 + $0x94] sm:$0xff]
        %v324 = vld [vmem:[%s1 + $0x9c] sm:$0xf]
        %v325 = vld [vmem:[%s241] sm:$0xff]
        %v326 = vld [vmem:[%s241 + $0x8] sm:$0xff]
        %v327 = vld [vmem:[%s241 + $0x10] sm:$0xff]
        %v328 = vld [vmem:[%s241 + $0x18] sm:$0xff]
        %v329 = vld [vmem:[%s241 + $0x20] sm:$0xff]
        %v330 = vld [vmem:[%s241 + $0x28] sm:$0xff]
        %v331 = vld [vmem:[%s241 + $0x30] sm:$0xff]
        %v332 = vld [vmem:[%s241 + $0x38] sm:$0xff]
        %v333 = vld [vmem:[%s241 + $0x40] sm:$0xff]
        %v334 = vld [vmem:[%s241 + $0x48] sm:$0xff]
        %v335 = vld [vmem:[%s241 + $0x50] sm:$0xff]
        %v336 = vld [vmem:[%s241 + $0x58] sm:$0xff]
        %v337 = vld [vmem:[%s241 + $0x60] sm:$0xff]
        %v338 = vld [vmem:[%s241 + $0x68] sm:$0xff]
        %v339 = vld [vmem:[%s241 + $0x70] sm:$0xff]
        %v340 = vld [vmem:[%s241 + $0x78] sm:$0xff]
        %v341 = vld [vmem:[%s241 + $0x80] sm:$0xff]
        %v342 = vld [vmem:[%s241 + $0x88] sm:$0xff]
        %v343 = vld [vmem:[%s241 + $0x90] sm:$0xff]
        %v344 = vld [vmem:[%s241 + $0x98] sm:$0xff]
        %v345 = vld [vmem:[%s241 + $0xa0] sm:$0xff]
        %v346 = vld [vmem:[%s241 + $0xa8] sm:$0xff]
        %v347 = vld [vmem:[%s241 + $0xb0] sm:$0xff]
        %v348 = vld [vmem:[%s241 + $0xb8] sm:$0xff]
        %v349 = vld [vmem:[%s241 + $0xc0] sm:$0xff]
        %v350 = vld [vmem:[%s241 + $0xc8] sm:$0xff]
        %v351 = vld [vmem:[%s241 + $0xd0] sm:$0xff]
        %v352 = vld [vmem:[%s241 + $0xd8] sm:$0xff]
        %v353 = vld [vmem:[%s241 + $0xe0] sm:$0xff]
        %v354 = vld [vmem:[%s241 + $0xe8] sm:$0xff]
        %v355 = vld [vmem:[%s241 + $0xf0] sm:$0xff]
        %v356 = vld [vmem:[%s241 + $0xf8] sm:$0xff]
        %v357 = vld [vmem:[%s241 + $0x100] sm:$0xff]
        %v358 = vld [vmem:[%s241 + $0x108] sm:$0xff]
        %v359 = vld [vmem:[%s241 + $0x110] sm:$0xff]
        %v360 = vld [vmem:[%s241 + $0x118] sm:$0xff]
        %v361 = vld [vmem:[%s241 + $0x120] sm:$0xff]
        %v362 = vld [vmem:[%s241 + $0x128] sm:$0xff]
        %v363 = vld [vmem:[%s241 + $0x130] sm:$0xff]
        %v364 = vld [vmem:[%s241 + $0x138] sm:$0xff]
        %v365 = vld [vmem:[%s241 + $0x140] sm:$0xff]
        %v366 = vld [vmem:[%s241 + $0x148] sm:$0xff]
        %v367 = vld [vmem:[%s241 + $0x150] sm:$0xff]
        %v368 = vld [vmem:[%s241 + $0x158] sm:$0xff]
        %v369 = vld [vmem:[%s241 + $0x160] sm:$0xff]
        %v370 = vld [vmem:[%s241 + $0x168] sm:$0xff]
        %v371 = vld [vmem:[%s241 + $0x170] sm:$0xff]
        %v372 = vld [vmem:[%s241 + $0x178] sm:$0xff]
        %v373 = vld [vmem:[%s241 + $0x180] sm:$0xff]
        %v374 = vld [vmem:[%s241 + $0x188] sm:$0xff]
        %v375 = vld [vmem:[%s241 + $0x190] sm:$0xff]
        %v376 = vld [vmem:[%s241 + $0x198] sm:$0xff]
        %v377 = vld [vmem:[%s241 + $0x1a0] sm:$0xff]
        %v378 = vld [vmem:[%s241 + $0x1a8] sm:$0xff]
        %v379 = vld [vmem:[%s241 + $0x1b0] sm:$0xff]
        %v380 = vld [vmem:[%s241 + $0x1b8] sm:$0xff]
        %v381 = vld [vmem:[%s241 + $0x1c0] sm:$0xff]
        %v382 = vld [vmem:[%s241 + $0x1c8] sm:$0xff]
        %v383 = vld [vmem:[%s241 + $0x1d0] sm:$0xff]
        %v384 = vld [vmem:[%s241 + $0x1d8] sm:$0xff]
        %v385 = vld [vmem:[%s241 + $0x1e0] sm:$0xff]
        %v386 = vld [vmem:[%s241 + $0x1e8] sm:$0xff]
        %v387 = vld [vmem:[%s241 + $0x1f0] sm:$0xff]
        %v388 = vld [vmem:[%s241 + $0x1f8] sm:$0xff]
        %v389 = vld [vmem:[%s241 + $0x200] sm:$0xff]
        %v390 = vld [vmem:[%s241 + $0x208] sm:$0xff]
        %v391 = vld [vmem:[%s241 + $0x210] sm:$0xff]
        %v392 = vld [vmem:[%s241 + $0x218] sm:$0xff]
        %v393 = vld [vmem:[%s241 + $0x220] sm:$0xff]
        %v394 = vld [vmem:[%s241 + $0x228] sm:$0xff]
        %v395 = vld [vmem:[%s241 + $0x230] sm:$0xff]
        %v396 = vld [vmem:[%s241 + $0x238] sm:$0xff]
        %398 = vset.pattern.permute.xlu0 0
        %399 = vperm.xlu0 %398, %v273
        %v400 = vpop.permute.xlu0 %399
        %403 = vset.pattern.permute.xlu0 0
        %404 = vperm.xlu0 %403, %v274
        %v405 = vpop.permute.xlu0 %404
        %408 = vset.pattern.permute.xlu0 0
        %409 = vperm.xlu0 %408, %v275
        %v410 = vpop.permute.xlu0 %409
        %413 = vset.pattern.permute.xlu0 0
        %414 = vperm.xlu0 %413, %v276
        %v415 = vpop.permute.xlu0 %414
        %418 = vset.pattern.permute.xlu0 0
        %419 = vperm.xlu0 %418, %v277
        %v420 = vpop.permute.xlu0 %419
        %423 = vset.pattern.permute.xlu0 0
        %424 = vperm.xlu0 %423, %v278
        %v425 = vpop.permute.xlu0 %424
        %428 = vset.pattern.permute.xlu0 0
        %429 = vperm.xlu0 %428, %v279
        %v430 = vpop.permute.xlu0 %429
        %433 = vset.pattern.permute.xlu0 0
        %434 = vperm.xlu0 %433, %v280
        %v435 = vpop.permute.xlu0 %434
        %v461 = vunpack.c.l.b16 %v301
        %v462 = vunpack.c.h.b16 %v301
        %v463 = vunpack.c.l.b16 %v302
        %v464 = vunpack.c.h.b16 %v302
        %v465 = vunpack.c.l.b16 %v303
        %v466 = vunpack.c.l.b16 %v304
        %v467 = vunpack.c.h.b16 %v304
        %v468 = vunpack.c.l.b16 %v305
        %v469 = vunpack.c.h.b16 %v305
        %v470 = vunpack.c.l.b16 %v306
        %v471 = vunpack.c.l.b16 %v307
        %v472 = vunpack.c.h.b16 %v307
        %v473 = vunpack.c.l.b16 %v308
        %v474 = vunpack.c.h.b16 %v308
        %v475 = vunpack.c.l.b16 %v309
        %v476 = vunpack.c.l.b16 %v310
        %v477 = vunpack.c.h.b16 %v310
        %v478 = vunpack.c.l.b16 %v311
        %v479 = vunpack.c.h.b16 %v311
        %v480 = vunpack.c.l.b16 %v312
        %v481 = vunpack.c.l.b16 %v313
        %v482 = vunpack.c.h.b16 %v313
        %v483 = vunpack.c.l.b16 %v314
        %v484 = vunpack.c.h.b16 %v314
        %v485 = vunpack.c.l.b16 %v315
        %v486 = vunpack.c.l.b16 %v316
        %v487 = vunpack.c.h.b16 %v316
        %v488 = vunpack.c.l.b16 %v317
        %v489 = vunpack.c.h.b16 %v317
        %v490 = vunpack.c.l.b16 %v318
        %v491 = vunpack.c.l.b16 %v319
        %v492 = vunpack.c.h.b16 %v319
        %v493 = vunpack.c.l.b16 %v320
        %v494 = vunpack.c.h.b16 %v320
        %v495 = vunpack.c.l.b16 %v321
        %v496 = vunpack.c.l.b16 %v322
        %v497 = vunpack.c.h.b16 %v322
        %v498 = vunpack.c.l.b16 %v323
        %v499 = vunpack.c.h.b16 %v323
        %v500 = vunpack.c.l.b16 %v324
        %v501 = vpack.c.b16 %v466, %v461
        %v502 = vpack.c.b16 %v467, %v462
        %v503 = vpack.c.b16 %v468, %v463
        %v504 = vpack.c.b16 %v469, %v464
        %v505 = vpack.c.b16 %v470, %v465
        %v506 = vpack.c.b16 %v476, %v471
        %v507 = vpack.c.b16 %v477, %v472
        %v508 = vpack.c.b16 %v478, %v473
        %v509 = vpack.c.b16 %v479, %v474
        %v510 = vpack.c.b16 %v480, %v475
        %v511 = vpack.c.b16 %v486, %v481
        %v512 = vpack.c.b16 %v487, %v482
        %v513 = vpack.c.b16 %v488, %v483
        %v514 = vpack.c.b16 %v489, %v484
        %v515 = vpack.c.b16 %v490, %v485
        %v516 = vpack.c.b16 %v496, %v491
        %v517 = vpack.c.b16 %v497, %v492
        %v518 = vpack.c.b16 %v498, %v493
        %v519 = vpack.c.b16 %v499, %v494
        %v520 = vpack.c.b16 %v500, %v495
        %v609 = vunpack.c.l.b16 %v325
        %v610 = vunpack.c.h.b16 %v325
        %v611 = vunpack.c.l.b16 %v326
        %v612 = vunpack.c.h.b16 %v326
        %v613 = vunpack.c.l.b16 %v327
        %v614 = vunpack.c.h.b16 %v327
        %v615 = vunpack.c.l.b16 %v328
        %v616 = vunpack.c.h.b16 %v328
        %v617 = vunpack.c.l.b16 %v329
        %v618 = vunpack.c.h.b16 %v329
        %v619 = vunpack.c.l.b16 %v330
        %v620 = vunpack.c.h.b16 %v330
        %v621 = vunpack.c.l.b16 %v331
        %v622 = vunpack.c.h.b16 %v331
        %v623 = vunpack.c.l.b16 %v332
        %v624 = vunpack.c.h.b16 %v332
        %v625 = vunpack.c.l.b16 %v333
        %v626 = vunpack.c.h.b16 %v333
        %v627 = vunpack.c.l.b16 %v334
        %v628 = vunpack.c.h.b16 %v334
        %v629 = vunpack.c.l.b16 %v335
        %v630 = vunpack.c.h.b16 %v335
        %v631 = vunpack.c.l.b16 %v336
        %v632 = vunpack.c.h.b16 %v336
        %v633 = vunpack.c.l.b16 %v337
        %v634 = vunpack.c.h.b16 %v337
        %v635 = vunpack.c.l.b16 %v338
        %v636 = vunpack.c.h.b16 %v338
        %v637 = vunpack.c.l.b16 %v339
        %v638 = vunpack.c.h.b16 %v339
        %v639 = vunpack.c.l.b16 %v340
        %v640 = vunpack.c.h.b16 %v340
        %v641 = vunpack.c.l.b16 %v341
        %v642 = vunpack.c.h.b16 %v341
        %v643 = vunpack.c.l.b16 %v342
        %v644 = vunpack.c.h.b16 %v342
        %v645 = vunpack.c.l.b16 %v343
        %v646 = vunpack.c.h.b16 %v343
        %v647 = vunpack.c.l.b16 %v344
        %v648 = vunpack.c.h.b16 %v344
        %v649 = vunpack.c.l.b16 %v345
        %v650 = vunpack.c.h.b16 %v345
        %v651 = vunpack.c.l.b16 %v346
        %v652 = vunpack.c.h.b16 %v346
        %v653 = vunpack.c.l.b16 %v347
        %v654 = vunpack.c.h.b16 %v347
        %v655 = vunpack.c.l.b16 %v348
        %v656 = vunpack.c.h.b16 %v348
        %v657 = vunpack.c.l.b16 %v349
        %v658 = vunpack.c.h.b16 %v349
        %v659 = vunpack.c.l.b16 %v350
        %v660 = vunpack.c.h.b16 %v350
        %v661 = vunpack.c.l.b16 %v351
        %v662 = vunpack.c.h.b16 %v351
        %v663 = vunpack.c.l.b16 %v352
        %v664 = vunpack.c.h.b16 %v352
        %v665 = vunpack.c.l.b16 %v353
        %v666 = vunpack.c.h.b16 %v353
        %v667 = vunpack.c.l.b16 %v354
        %v668 = vunpack.c.h.b16 %v354
        %v669 = vunpack.c.l.b16 %v355
        %v670 = vunpack.c.h.b16 %v355
        %v671 = vunpack.c.l.b16 %v356
        %v672 = vunpack.c.h.b16 %v356
        %v673 = vunpack.c.l.b16 %v357
        %v674 = vunpack.c.h.b16 %v357
        %v675 = vunpack.c.l.b16 %v358
        %v676 = vunpack.c.h.b16 %v358
        %v677 = vunpack.c.l.b16 %v359
        %v678 = vunpack.c.h.b16 %v359
        %v679 = vunpack.c.l.b16 %v360
        %v680 = vunpack.c.h.b16 %v360
        %v681 = vunpack.c.l.b16 %v361
        %v682 = vunpack.c.h.b16 %v361
        %v683 = vunpack.c.l.b16 %v362
        %v684 = vunpack.c.h.b16 %v362
        %v685 = vunpack.c.l.b16 %v363
        %v686 = vunpack.c.h.b16 %v363
        %v687 = vunpack.c.l.b16 %v364
        %v688 = vunpack.c.h.b16 %v364
        %v689 = vunpack.c.l.b16 %v365
        %v690 = vunpack.c.h.b16 %v365
        %v691 = vunpack.c.l.b16 %v366
        %v692 = vunpack.c.h.b16 %v366
        %v693 = vunpack.c.l.b16 %v367
        %v694 = vunpack.c.h.b16 %v367
        %v695 = vunpack.c.l.b16 %v368
        %v696 = vunpack.c.h.b16 %v368
        %v697 = vunpack.c.l.b16 %v369
        %v698 = vunpack.c.h.b16 %v369
        %v699 = vunpack.c.l.b16 %v370
        %v700 = vunpack.c.h.b16 %v370
        %v701 = vunpack.c.l.b16 %v371
        %v702 = vunpack.c.h.b16 %v371
        %v703 = vunpack.c.l.b16 %v372
        %v704 = vunpack.c.h.b16 %v372
        %v705 = vunpack.c.l.b16 %v373
        %v706 = vunpack.c.h.b16 %v373
        %v707 = vunpack.c.l.b16 %v374
        %v708 = vunpack.c.h.b16 %v374
        %v709 = vunpack.c.l.b16 %v375
        %v710 = vunpack.c.h.b16 %v375
        %v711 = vunpack.c.l.b16 %v376
        %v712 = vunpack.c.h.b16 %v376
        %v713 = vunpack.c.l.b16 %v377
        %v714 = vunpack.c.h.b16 %v377
        %v715 = vunpack.c.l.b16 %v378
        %v716 = vunpack.c.h.b16 %v378
        %v717 = vunpack.c.l.b16 %v379
        %v718 = vunpack.c.h.b16 %v379
        %v719 = vunpack.c.l.b16 %v380
        %v720 = vunpack.c.h.b16 %v380
        %v721 = vunpack.c.l.b16 %v381
        %v722 = vunpack.c.h.b16 %v381
        %v723 = vunpack.c.l.b16 %v382
        %v724 = vunpack.c.h.b16 %v382
        %v725 = vunpack.c.l.b16 %v383
        %v726 = vunpack.c.h.b16 %v383
        %v727 = vunpack.c.l.b16 %v384
        %v728 = vunpack.c.h.b16 %v384
        %v729 = vunpack.c.l.b16 %v385
        %v730 = vunpack.c.h.b16 %v385
        %v731 = vunpack.c.l.b16 %v386
        %v732 = vunpack.c.h.b16 %v386
        %v733 = vunpack.c.l.b16 %v387
        %v734 = vunpack.c.h.b16 %v387
        %v735 = vunpack.c.l.b16 %v388
        %v736 = vunpack.c.h.b16 %v388
        %v737 = vunpack.c.l.b16 %v389
        %v738 = vunpack.c.h.b16 %v389
        %v739 = vunpack.c.l.b16 %v390
        %v740 = vunpack.c.h.b16 %v390
        %v741 = vunpack.c.l.b16 %v391
        %v742 = vunpack.c.h.b16 %v391
        %v743 = vunpack.c.l.b16 %v392
        %v744 = vunpack.c.h.b16 %v392
        %v745 = vunpack.c.l.b16 %v393
        %v746 = vunpack.c.h.b16 %v393
        %v747 = vunpack.c.l.b16 %v394
        %v748 = vunpack.c.h.b16 %v394
        %v749 = vunpack.c.l.b16 %v395
        %v750 = vunpack.c.h.b16 %v395
        %v751 = vunpack.c.l.b16 %v396
        %v752 = vunpack.c.h.b16 %v396
        %v753 = vpack.c.b16 %v611, %v609
        %v754 = vpack.c.b16 %v612, %v610
        %v755 = vpack.c.b16 %v615, %v613
        %v756 = vpack.c.b16 %v616, %v614
        %v757 = vpack.c.b16 %v619, %v617
        %v758 = vpack.c.b16 %v620, %v618
        %v759 = vpack.c.b16 %v623, %v621
        %v760 = vpack.c.b16 %v624, %v622
        %v761 = vpack.c.b16 %v627, %v625
        %v762 = vpack.c.b16 %v628, %v626
        %v763 = vpack.c.b16 %v631, %v629
        %v764 = vpack.c.b16 %v632, %v630
        %v765 = vpack.c.b16 %v635, %v633
        %v766 = vpack.c.b16 %v636, %v634
        %v767 = vpack.c.b16 %v639, %v637
        %v768 = vpack.c.b16 %v640, %v638
        %v769 = vpack.c.b16 %v643, %v641
        %v770 = vpack.c.b16 %v644, %v642
        %v771 = vpack.c.b16 %v647, %v645
        %v772 = vpack.c.b16 %v648, %v646
        %v773 = vpack.c.b16 %v651, %v649
        %v774 = vpack.c.b16 %v652, %v650
        %v775 = vpack.c.b16 %v655, %v653
        %v776 = vpack.c.b16 %v656, %v654
        %v777 = vpack.c.b16 %v659, %v657
        %v778 = vpack.c.b16 %v660, %v658
        %v779 = vpack.c.b16 %v663, %v661
        %v780 = vpack.c.b16 %v664, %v662
        %v781 = vpack.c.b16 %v667, %v665
        %v782 = vpack.c.b16 %v668, %v666
        %v783 = vpack.c.b16 %v671, %v669
        %v784 = vpack.c.b16 %v672, %v670
        %v785 = vpack.c.b16 %v675, %v673
        %v786 = vpack.c.b16 %v676, %v674
        %v787 = vpack.c.b16 %v679, %v677
        %v788 = vpack.c.b16 %v680, %v678
        %v789 = vpack.c.b16 %v683, %v681
        %v790 = vpack.c.b16 %v684, %v682
        %v791 = vpack.c.b16 %v687, %v685
        %v792 = vpack.c.b16 %v688, %v686
        %v793 = vpack.c.b16 %v691, %v689
        %v794 = vpack.c.b16 %v692, %v690
        %v795 = vpack.c.b16 %v695, %v693
        %v796 = vpack.c.b16 %v696, %v694
        %v797 = vpack.c.b16 %v699, %v697
        %v798 = vpack.c.b16 %v700, %v698
        %v799 = vpack.c.b16 %v703, %v701
        %v800 = vpack.c.b16 %v704, %v702
        %v801 = vpack.c.b16 %v707, %v705
        %v802 = vpack.c.b16 %v708, %v706
        %v803 = vpack.c.b16 %v711, %v709
        %v804 = vpack.c.b16 %v712, %v710
        %v805 = vpack.c.b16 %v715, %v713
        %v806 = vpack.c.b16 %v716, %v714
        %v807 = vpack.c.b16 %v719, %v717
        %v808 = vpack.c.b16 %v720, %v718
        %v809 = vpack.c.b16 %v723, %v721
        %v810 = vpack.c.b16 %v724, %v722
        %v811 = vpack.c.b16 %v727, %v725
        %v812 = vpack.c.b16 %v728, %v726
        %v813 = vpack.c.b16 %v731, %v729
        %v814 = vpack.c.b16 %v732, %v730
        %v815 = vpack.c.b16 %v735, %v733
        %v816 = vpack.c.b16 %v736, %v734
        %v817 = vpack.c.b16 %v739, %v737
        %v818 = vpack.c.b16 %v740, %v738
        %v819 = vpack.c.b16 %v743, %v741
        %v820 = vpack.c.b16 %v744, %v742
        %v821 = vpack.c.b16 %v747, %v745
        %v822 = vpack.c.b16 %v748, %v746
        %v823 = vpack.c.b16 %v751, %v749
        %v824 = vpack.c.b16 %v752, %v750
        %vm897 = vcmask 523264
        %v899 = vsel %vm897, %v505, 0
        %v902 = vsel %vm897, %v510, 0
        %v905 = vsel %vm897, %v515, 0
        %v908 = vsel %vm897, %v520, 0
        %910 = vmatprep.subr.bf16.mxu0 %v768
        %911 = vmatpush1.bf16.msra.mxu0 %v767
        %912 = vmatprep.subr.bf16.mxu0 %v766
        %913 = vmatpush1.bf16.msra.mxu0 %v765
        %914 = vmatprep.subr.bf16.mxu0 %v764
        %915 = vmatpush1.bf16.msra.mxu0 %v763
        %916 = vmatprep.subr.bf16.mxu0 %v762
        %917 = vmatpush1.bf16.msra.mxu0 %v761
        %918 = vmatprep.subr.bf16.mxu0 %v760
        %919 = vmatpush1.bf16.msra.mxu0 %v759
        %920 = vmatprep.subr.bf16.mxu0 %v758
        %921 = vmatpush1.bf16.msra.mxu0 %v757
        %922 = vmatprep.subr.bf16.mxu0 %v756
        %923 = vmatpush1.bf16.msra.mxu0 %v755
        %924 = vmatprep.subr.bf16.mxu0 %v754
        %925 = vmatpush1.bf16.msra.mxu0 %v753
        %926 = vmatprep.subr.bf16.mxu0 %v784
        %927 = vmatpush2.bf16.msra.mxu0 %v783
        %928 = vmatprep.subr.bf16.mxu0 %v782
        %929 = vmatpush2.bf16.msra.mxu0 %v781
        %930 = vmatprep.subr.bf16.mxu0 %v780
        %931 = vmatpush2.bf16.msra.mxu0 %v779
        %932 = vmatprep.subr.bf16.mxu0 %v778
        %933 = vmatpush2.bf16.msra.mxu0 %v777
        %934 = vmatprep.subr.bf16.mxu0 %v776
        %935 = vmatpush2.bf16.msra.mxu0 %v775
        %936 = vmatprep.subr.bf16.mxu0 %v774
        %937 = vmatpush2.bf16.msra.mxu0 %v773
        %938 = vmatprep.subr.bf16.mxu0 %v772
        %939 = vmatpush2.bf16.msra.mxu0 %v771
        %940 = vmatprep.subr.bf16.mxu0 %v770
        %941 = vmatpush2.bf16.msra.mxu0 %v769
        %942 = vmatprep.mubr.bf16.mxu0 %v502
        %943 = vmatmul.mubr.bf16.gmra.mxu0 %v501
        %v944 = vpop.f32.mrf.mxu0
        %v945 = vadd.f32 %v400, %v944
        %v946 = vpop.f32.mrf.mxu0
        %v947 = vadd.f32 %v400, %v946
        %v948 = vpop.f32.mrf.mxu0
        %v949 = vadd.f32 %v405, %v948
        %v950 = vpop.f32.mrf.mxu0
        %v951 = vadd.f32 %v405, %v950
        %952 = vmatprep.mubr.bf16.mxu0 %v507
        %953 = vmatmul.mubr.bf16.gmra.mxu0 %v506
        %v954 = vpop.f32.mrf.mxu0
        %v955 = vadd.f32 %v410, %v954
        %v956 = vpop.f32.mrf.mxu0
        %v957 = vadd.f32 %v410, %v956
        %v958 = vpop.f32.mrf.mxu0
        %v959 = vadd.f32 %v415, %v958
        %v960 = vpop.f32.mrf.mxu0
        %v961 = vadd.f32 %v415, %v960
        %962 = vmatprep.mubr.bf16.mxu0 %v512
        %963 = vmatmul.mubr.bf16.gmra.mxu0 %v511
        %v964 = vpop.f32.mrf.mxu0
        %v965 = vadd.f32 %v420, %v964
        %v966 = vpop.f32.mrf.mxu0
        %v967 = vadd.f32 %v420, %v966
        %v968 = vpop.f32.mrf.mxu0
        %v969 = vadd.f32 %v425, %v968
        %v970 = vpop.f32.mrf.mxu0
        %v971 = vadd.f32 %v425, %v970
        %972 = vmatprep.mubr.bf16.mxu0 %v517
        %973 = vmatmul.mubr.bf16.gmra.mxu0 %v516
        %v974 = vpop.f32.mrf.mxu0
        %v975 = vadd.f32 %v430, %v974
        %v976 = vpop.f32.mrf.mxu0
        %v977 = vadd.f32 %v430, %v976
        %v978 = vpop.f32.mrf.mxu0
        %v979 = vadd.f32 %v435, %v978
        %v980 = vpop.f32.mrf.mxu0
        %v981 = vadd.f32 %v435, %v980
        %982 = vdwg.mxu0
        %983 = vmatprep.subr.bf16.mxu0 %v800
        %984 = vmatpush1.bf16.msra.mxu0 %v799
        %985 = vmatprep.subr.bf16.mxu0 %v798
        %986 = vmatpush1.bf16.msra.mxu0 %v797
        %987 = vmatprep.subr.bf16.mxu0 %v796
        %988 = vmatpush1.bf16.msra.mxu0 %v795
        %989 = vmatprep.subr.bf16.mxu0 %v794
        %990 = vmatpush1.bf16.msra.mxu0 %v793
        %991 = vmatprep.subr.bf16.mxu0 %v792
        %992 = vmatpush1.bf16.msra.mxu0 %v791
        %993 = vmatprep.subr.bf16.mxu0 %v790
        %994 = vmatpush1.bf16.msra.mxu0 %v789
        %995 = vmatprep.subr.bf16.mxu0 %v788
        %996 = vmatpush1.bf16.msra.mxu0 %v787
        %997 = vmatprep.subr.bf16.mxu0 %v786
        %998 = vmatpush1.bf16.msra.mxu0 %v785
        %999 = vmatprep.subr.bf16.mxu0 %v816
        %1000 = vmatpush2.bf16.msra.mxu0 %v815
        %1001 = vmatprep.subr.bf16.mxu0 %v814
        %1002 = vmatpush2.bf16.msra.mxu0 %v813
        %1003 = vmatprep.subr.bf16.mxu0 %v812
        %1004 = vmatpush2.bf16.msra.mxu0 %v811
        %1005 = vmatprep.subr.bf16.mxu0 %v810
        %1006 = vmatpush2.bf16.msra.mxu0 %v809
        %1007 = vmatprep.subr.bf16.mxu0 %v808
        %1008 = vmatpush2.bf16.msra.mxu0 %v807
        %1009 = vmatprep.subr.bf16.mxu0 %v806
        %1010 = vmatpush2.bf16.msra.mxu0 %v805
        %1011 = vmatprep.subr.bf16.mxu0 %v804
        %1012 = vmatpush2.bf16.msra.mxu0 %v803
        %1013 = vmatprep.subr.bf16.mxu0 %v802
        %1014 = vmatpush2.bf16.msra.mxu0 %v801
        %1015 = vmatprep.mubr.bf16.mxu0 %v504
        %1016 = vmatmul.mubr.bf16.gmra.mxu0 %v503
        %v1017 = vpop.f32.mrf.mxu0
        %v1018 = vadd.f32 %v945, %v1017
        %v1019 = vpop.f32.mrf.mxu0
        %v1020 = vadd.f32 %v947, %v1019
        %v1021 = vpop.f32.mrf.mxu0
        %v1022 = vadd.f32 %v949, %v1021
        %v1023 = vpop.f32.mrf.mxu0
        %v1024 = vadd.f32 %v951, %v1023
        %1025 = vmatprep.mubr.bf16.mxu0 %v509
        %1026 = vmatmul.mubr.bf16.gmra.mxu0 %v508
        %v1027 = vpop.f32.mrf.mxu0
        %v1028 = vadd.f32 %v955, %v1027
        %v1029 = vpop.f32.mrf.mxu0
        %v1030 = vadd.f32 %v957, %v1029
        %v1031 = vpop.f32.mrf.mxu0
        %v1032 = vadd.f32 %v959, %v1031
        %v1033 = vpop.f32.mrf.mxu0
        %v1034 = vadd.f32 %v961, %v1033
        %1035 = vmatprep.mubr.bf16.mxu0 %v514
        %1036 = vmatmul.mubr.bf16.gmra.mxu0 %v513
        %v1037 = vpop.f32.mrf.mxu0
        %v1038 = vadd.f32 %v965, %v1037
        %v1039 = vpop.f32.mrf.mxu0
        %v1040 = vadd.f32 %v967, %v1039
        %v1041 = vpop.f32.mrf.mxu0
        %v1042 = vadd.f32 %v969, %v1041
        %v1043 = vpop.f32.mrf.mxu0
        %v1044 = vadd.f32 %v971, %v1043
        %1045 = vmatprep.mubr.bf16.mxu0 %v519
        %1046 = vmatmul.mubr.bf16.gmra.mxu0 %v518
        %v1047 = vpop.f32.mrf.mxu0
        %v1048 = vadd.f32 %v975, %v1047
        %v1049 = vpop.f32.mrf.mxu0
        %v1050 = vadd.f32 %v977, %v1049
        %v1051 = vpop.f32.mrf.mxu0
        %v1052 = vadd.f32 %v979, %v1051
        %v1053 = vpop.f32.mrf.mxu0
        %v1054 = vadd.f32 %v981, %v1053
        %1055 = vdwg.mxu0
        %1056 = vmatprep.subr.bf16.mxu0 0
        %1057 = vmatpush1.bf16.msra.mxu0 0
        %1058 = vmatprep.subr.bf16.mxu0 0
        %1059 = vmatpush1.bf16.msra.mxu0 0
        %1060 = vmatprep.subr.bf16.mxu0 0
        %1061 = vmatpush1.bf16.msra.mxu0 0
        %1062 = vmatprep.subr.bf16.mxu0 0
        %1063 = vmatpush1.bf16.msra.mxu0 0
        %1064 = vmatprep.subr.bf16.mxu0 %v824
        %1065 = vmatpush1.bf16.msra.mxu0 %v823
        %1066 = vmatprep.subr.bf16.mxu0 %v822
        %1067 = vmatpush1.bf16.msra.mxu0 %v821
        %1068 = vmatprep.subr.bf16.mxu0 %v820
        %1069 = vmatpush1.bf16.msra.mxu0 %v819
        %1070 = vmatprep.subr.bf16.mxu0 %v818
        %1071 = vmatpush1.bf16.msra.mxu0 %v817
        %1072 = vmatprep.subr.bf16.mxu0 0
        %1073 = vmatpush2.bf16.msra.mxu0 0
        %1074 = vmatprep.subr.bf16.mxu0 0
        %1075 = vmatpush2.bf16.msra.mxu0 0
        %1076 = vmatprep.subr.bf16.mxu0 0
        %1077 = vmatpush2.bf16.msra.mxu0 0
        %1078 = vmatprep.subr.bf16.mxu0 0
        %1079 = vmatpush2.bf16.msra.mxu0 0
        %1080 = vmatprep.subr.bf16.mxu0 0
        %1081 = vmatpush2.bf16.msra.mxu0 0
        %1082 = vmatprep.subr.bf16.mxu0 0
        %1083 = vmatpush2.bf16.msra.mxu0 0
        %1084 = vmatprep.subr.bf16.mxu0 0
        %1085 = vmatpush2.bf16.msra.mxu0 0
        %1086 = vmatprep.subr.bf16.mxu0 0
        %1087 = vmatpush2.bf16.msra.mxu0 0
        %1088 = vmatprep.mubr.bf16.mxu0 0
        %1089 = vmatmul.mubr.bf16.gmra.mxu0 %v899
        %v1090 = vpop.f32.mrf.mxu0
        %v1091 = vadd.f32 %v1018, %v1090
        %v1092 = vpop.f32.mrf.mxu0
        %v1093 = vadd.f32 %v1020, %v1092
        %v1094 = vpop.f32.mrf.mxu0
        %v1095 = vadd.f32 %v1022, %v1094
        %v1096 = vpop.f32.mrf.mxu0
        %v1097 = vadd.f32 %v1024, %v1096
        %1098 = vmatprep.mubr.bf16.mxu0 0
        %1099 = vmatmul.mubr.bf16.gmra.mxu0 %v902
        %v1100 = vpop.f32.mrf.mxu0
        %v1101 = vadd.f32 %v1028, %v1100
        %v1102 = vpop.f32.mrf.mxu0
        %v1103 = vadd.f32 %v1030, %v1102
        %v1104 = vpop.f32.mrf.mxu0
        %v1105 = vadd.f32 %v1032, %v1104
        %v1106 = vpop.f32.mrf.mxu0
        %v1107 = vadd.f32 %v1034, %v1106
        %1108 = vmatprep.mubr.bf16.mxu0 0
        %1109 = vmatmul.mubr.bf16.gmra.mxu0 %v905
        %v1110 = vpop.f32.mrf.mxu0
        %v1111 = vadd.f32 %v1038, %v1110
        %v1112 = vpop.f32.mrf.mxu0
        %v1113 = vadd.f32 %v1040, %v1112
        %v1114 = vpop.f32.mrf.mxu0
        %v1115 = vadd.f32 %v1042, %v1114
        %v1116 = vpop.f32.mrf.mxu0
        %v1117 = vadd.f32 %v1044, %v1116
        %1118 = vmatprep.mubr.bf16.mxu0 0
        %1119 = vmatmul.mubr.bf16.gmra.mxu0 %v908
        %v1120 = vpop.f32.mrf.mxu0
        %v1121 = vadd.f32 %v1048, %v1120
        %v1122 = vpop.f32.mrf.mxu0
        %v1123 = vadd.f32 %v1050, %v1122
        %v1124 = vpop.f32.mrf.mxu0
        %v1125 = vadd.f32 %v1052, %v1124
        %v1126 = vpop.f32.mrf.mxu0
        %v1127 = vadd.f32 %v1054, %v1126
        %1128 = vdwg.mxu0
        %v1129 = vmax.f32 %v1091, 0.0
        %v1130 = vmax.f32 %v1093, 0.0
        %v1131 = vmax.f32 %v1095, 0.0
        %v1132 = vmax.f32 %v1097, 0.0
        %v1133 = vmax.f32 %v1101, 0.0
        %v1134 = vmax.f32 %v1103, 0.0
        %v1135 = vmax.f32 %v1105, 0.0
        %v1136 = vmax.f32 %v1107, 0.0
        %v1137 = vmax.f32 %v1111, 0.0
        %v1138 = vmax.f32 %v1113, 0.0
        %v1139 = vmax.f32 %v1115, 0.0
        %v1140 = vmax.f32 %v1117, 0.0
        %v1141 = vmax.f32 %v1121, 0.0
        %v1142 = vmax.f32 %v1123, 0.0
        %v1143 = vmax.f32 %v1125, 0.0
        %v1144 = vmax.f32 %v1127, 0.0
        %v1145 = vld [vmem:[%s241 + $0x100] sm:$0xff]
        %v1146 = vld [vmem:[%s241 + $0x108] sm:$0xff]
        %v1147 = vld [vmem:[%s241 + $0x110] sm:$0xff]
        %v1148 = vld [vmem:[%s241 + $0x118] sm:$0xff]
        %v1149 = vld [vmem:[%s241 + $0x120] sm:$0xff]
        %v1150 = vld [vmem:[%s241 + $0x128] sm:$0xff]
        %v1151 = vld [vmem:[%s241 + $0x130] sm:$0xff]
        %v1152 = vld [vmem:[%s241 + $0x138] sm:$0xff]
        %v1153 = vld [vmem:[%s2] sm:$0xf]
        %v1154 = vld [vmem:[%s2 + $0x4] sm:$0xf]
        %v1155 = vld [vmem:[%s2 + $0x8] sm:$0xf]
        %v1156 = vld [vmem:[%s2 + $0xc] sm:$0xf]
        %v1157 = vld [vmem:[%s2 + $0x10] sm:$0xf]
        %v1158 = vld [vmem:[%s2 + $0x14] sm:$0xf]
        %v1159 = vld [vmem:[%s2 + $0x18] sm:$0xf]
        %v1160 = vld [vmem:[%s2 + $0x1c] sm:$0xf]
        %1162 = vset.pattern.permute.xlu0 0
        %1163 = vperm.xlu0 %1162, %v281
        %v1164 = vpop.permute.xlu0 %1163
        %1167 = vset.pattern.permute.xlu0 0
        %1168 = vperm.xlu0 %1167, %v282
        %v1169 = vpop.permute.xlu0 %1168
        %1172 = vset.pattern.permute.xlu0 0
        %1173 = vperm.xlu0 %1172, %v283
        %v1174 = vpop.permute.xlu0 %1173
        %1177 = vset.pattern.permute.xlu0 0
        %1178 = vperm.xlu0 %1177, %v284
        %v1179 = vpop.permute.xlu0 %1178
        %1182 = vset.pattern.permute.xlu0 0
        %1183 = vperm.xlu0 %1182, %v285
        %v1184 = vpop.permute.xlu0 %1183
        %1187 = vset.pattern.permute.xlu0 0
        %1188 = vperm.xlu0 %1187, %v286
        %v1189 = vpop.permute.xlu0 %1188
        %1192 = vset.pattern.permute.xlu0 0
        %1193 = vperm.xlu0 %1192, %v287
        %v1194 = vpop.permute.xlu0 %1193
        %1197 = vset.pattern.permute.xlu0 0
        %1198 = vperm.xlu0 %1197, %v288
        %v1199 = vpop.permute.xlu0 %1198
        %v1209 = vunpack.c.l.b16 %v1153
        %v1210 = vunpack.c.l.b16 %v1154
        %v1211 = vunpack.c.l.b16 %v1155
        %v1212 = vunpack.c.l.b16 %v1156
        %v1213 = vunpack.c.l.b16 %v1157
        %v1214 = vunpack.c.l.b16 %v1158
        %v1215 = vunpack.c.l.b16 %v1159
        %v1216 = vunpack.c.l.b16 %v1160
        %v1217 = vpack.c.b16 %v1210, %v1209
        %v1218 = vpack.c.b16 %v1212, %v1211
        %v1219 = vpack.c.b16 %v1214, %v1213
        %v1220 = vpack.c.b16 %v1216, %v1215
        %v1229 = vunpack.c.l.b16 %v1145
        %v1230 = vunpack.c.h.b16 %v1145
        %v1231 = vunpack.c.l.b16 %v1146
        %v1232 = vunpack.c.h.b16 %v1146
        %v1233 = vunpack.c.l.b16 %v1147
        %v1234 = vunpack.c.h.b16 %v1147
        %v1235 = vunpack.c.l.b16 %v1148
        %v1236 = vunpack.c.h.b16 %v1148
        %v1237 = vunpack.c.l.b16 %v1149
        %v1238 = vunpack.c.h.b16 %v1149
        %v1239 = vunpack.c.l.b16 %v1150
        %v1240 = vunpack.c.h.b16 %v1150
        %v1241 = vunpack.c.l.b16 %v1151
        %v1242 = vunpack.c.h.b16 %v1151
        %v1243 = vunpack.c.l.b16 %v1152
        %v1244 = vunpack.c.h.b16 %v1152
        %v1245 = vpack.c.b16 %v1231, %v1229
        %v1246 = vpack.c.b16 %v1232, %v1230
        %v1247 = vpack.c.b16 %v1235, %v1233
        %v1248 = vpack.c.b16 %v1236, %v1234
        %v1249 = vpack.c.b16 %v1239, %v1237
        %v1250 = vpack.c.b16 %v1240, %v1238
        %v1251 = vpack.c.b16 %v1243, %v1241
        %v1252 = vpack.c.b16 %v1244, %v1242
        %v1262 = vsel %vm897, %v1217, 0
        %v1265 = vsel %vm897, %v1218, 0
        %v1268 = vsel %vm897, %v1219, 0
        %v1271 = vsel %vm897, %v1220, 0
        %1273 = vmatprep.subr.bf16.mxu0 0
        %1274 = vmatpush1.bf16.msra.mxu0 0
        %1275 = vmatprep.subr.bf16.mxu0 0
        %1276 = vmatpush1.bf16.msra.mxu0 0
        %1277 = vmatprep.subr.bf16.mxu0 0
        %1278 = vmatpush1.bf16.msra.mxu0 0
        %1279 = vmatprep.subr.bf16.mxu0 0
        %1280 = vmatpush1.bf16.msra.mxu0 0
        %1281 = vmatprep.subr.bf16.mxu0 %v1252
        %1282 = vmatpush1.bf16.msra.mxu0 %v1251
        %1283 = vmatprep.subr.bf16.mxu0 %v1250
        %1284 = vmatpush1.bf16.msra.mxu0 %v1249
        %1285 = vmatprep.subr.bf16.mxu0 %v1248
        %1286 = vmatpush1.bf16.msra.mxu0 %v1247
        %1287 = vmatprep.subr.bf16.mxu0 %v1246
        %1288 = vmatpush1.bf16.msra.mxu0 %v1245
        %1289 = vmatprep.subr.bf16.mxu0 0
        %1290 = vmatpush2.bf16.msra.mxu0 0
        %1291 = vmatprep.subr.bf16.mxu0 0
        %1292 = vmatpush2.bf16.msra.mxu0 0
        %1293 = vmatprep.subr.bf16.mxu0 0
        %1294 = vmatpush2.bf16.msra.mxu0 0
        %1295 = vmatprep.subr.bf16.mxu0 0
        %1296 = vmatpush2.bf16.msra.mxu0 0
        %1297 = vmatprep.subr.bf16.mxu0 0
        %1298 = vmatpush2.bf16.msra.mxu0 0
        %1299 = vmatprep.subr.bf16.mxu0 0
        %1300 = vmatpush2.bf16.msra.mxu0 0
        %1301 = vmatprep.subr.bf16.mxu0 0
        %1302 = vmatpush2.bf16.msra.mxu0 0
        %1303 = vmatprep.subr.bf16.mxu0 0
        %1304 = vmatpush2.bf16.msra.mxu0 0
        %1305 = vmatprep.mubr.bf16.mxu0 0
        %1306 = vmatmul.mubr.bf16.gmra.mxu0 %v1262
        %v1307 = vpop.f32.mrf.mxu0
        %v1308 = vadd.f32 %v1164, %v1307
        %v1309 = vpop.f32.mrf.mxu0
        %v1310 = vadd.f32 %v1164, %v1309
        %v1311 = vpop.f32.mrf.mxu0
        %v1312 = vadd.f32 %v1169, %v1311
        %v1313 = vpop.f32.mrf.mxu0
        %v1314 = vadd.f32 %v1169, %v1313
        %1315 = vmatprep.mubr.bf16.mxu0 0
        %1316 = vmatmul.mubr.bf16.gmra.mxu0 %v1265
        %v1317 = vpop.f32.mrf.mxu0
        %v1318 = vadd.f32 %v1174, %v1317
        %v1319 = vpop.f32.mrf.mxu0
        %v1320 = vadd.f32 %v1174, %v1319
        %v1321 = vpop.f32.mrf.mxu0
        %v1322 = vadd.f32 %v1179, %v1321
        %v1323 = vpop.f32.mrf.mxu0
        %v1324 = vadd.f32 %v1179, %v1323
        %1325 = vmatprep.mubr.bf16.mxu0 0
        %1326 = vmatmul.mubr.bf16.gmra.mxu0 %v1268
        %v1327 = vpop.f32.mrf.mxu0
        %v1328 = vadd.f32 %v1184, %v1327
        %v1329 = vpop.f32.mrf.mxu0
        %v1330 = vadd.f32 %v1184, %v1329
        %v1331 = vpop.f32.mrf.mxu0
        %v1332 = vadd.f32 %v1189, %v1331
        %v1333 = vpop.f32.mrf.mxu0
        %v1334 = vadd.f32 %v1189, %v1333
        %1335 = vmatprep.mubr.bf16.mxu0 0
        %1336 = vmatmul.mubr.bf16.gmra.mxu0 %v1271
        %v1337 = vpop.f32.mrf.mxu0
        %v1338 = vadd.f32 %v1194, %v1337
        %v1339 = vpop.f32.mrf.mxu0
        %v1340 = vadd.f32 %v1194, %v1339
        %v1341 = vpop.f32.mrf.mxu0
        %v1342 = vadd.f32 %v1199, %v1341
        %v1343 = vpop.f32.mrf.mxu0
        %v1344 = vadd.f32 %v1199, %v1343
        %1345 = vdwg.mxu0
        %v1346 = vpack.c.bf16 %v1131, %v1129
        %v1347 = vpack.c.bf16 %v1132, %v1130
        %v1348 = vpack.c.bf16 %v1135, %v1133
        %v1349 = vpack.c.bf16 %v1136, %v1134
        %v1350 = vpack.c.bf16 %v1139, %v1137
        %v1351 = vpack.c.bf16 %v1140, %v1138
        %v1352 = vpack.c.bf16 %v1143, %v1141
        %v1353 = vpack.c.bf16 %v1144, %v1142
        %v1362 = vunpack.c.l.b16 %v1346
        %v1363 = vunpack.c.l.b16 %v1347
        %v1364 = vunpack.c.h.b16 %v1346
        %v1365 = vunpack.c.h.b16 %v1347
        %v1366 = vunpack.c.l.b16 %v1348
        %v1367 = vunpack.c.l.b16 %v1349
        %v1368 = vunpack.c.h.b16 %v1348
        %v1369 = vunpack.c.h.b16 %v1349
        %v1370 = vunpack.c.l.b16 %v1350
        %v1371 = vunpack.c.l.b16 %v1351
        %v1372 = vunpack.c.h.b16 %v1350
        %v1373 = vunpack.c.h.b16 %v1351
        %v1374 = vunpack.c.l.b16 %v1352
        %v1375 = vunpack.c.l.b16 %v1353
        %v1376 = vunpack.c.h.b16 %v1352
        %v1377 = vunpack.c.h.b16 %v1353
        %v1378 = vpack.c.b16 %v1363, %v1362
        %v1379 = vpack.c.b16 %v1365, %v1364
        %v1380 = vpack.c.b16 %v1367, %v1366
        %v1381 = vpack.c.b16 %v1369, %v1368
        %v1382 = vpack.c.b16 %v1371, %v1370
        %v1383 = vpack.c.b16 %v1373, %v1372
        %v1384 = vpack.c.b16 %v1375, %v1374
        %v1385 = vpack.c.b16 %v1377, %v1376
        %1394 = vst [vmem:[#allocation2] sm:$0xff] %v1378
        %1395 = vst [vmem:[#allocation2 + $0x8] sm:$0xff] %v1379
        %1396 = vst [vmem:[#allocation2 + $0x10] sm:$0xff] %v1380
        %1397 = vst [vmem:[#allocation2 + $0x18] sm:$0xff] %v1381
        %1398 = vst [vmem:[#allocation2 + $0x20] sm:$0xff] %v1382
        %1399 = vst [vmem:[#allocation2 + $0x28] sm:$0xff] %v1383
        %1400 = vst [vmem:[#allocation2 + $0x30] sm:$0xff] %v1384
        %1401 = vst [vmem:[#allocation2 + $0x38] sm:$0xff] %v1385
        %1402 = vst [vmem:[#allocation2 + $0x40] sm:$0xff] %v1145
        %1403 = vst [vmem:[#allocation2 + $0x48] sm:$0xff] %v1146
        %1404 = vst [vmem:[#allocation2 + $0x50] sm:$0xff] %v1147
        %1405 = vst [vmem:[#allocation2 + $0x58] sm:$0xff] %v1148
        %1406 = vst [vmem:[#allocation2 + $0x60] sm:$0xff] %v1149
        %1407 = vst [vmem:[#allocation2 + $0x68] sm:$0xff] %v1150
        %1408 = vst [vmem:[#allocation2 + $0x70] sm:$0xff] %v1151
        %1409 = vst [vmem:[#allocation2 + $0x78] sm:$0xff] %v1152
        %v1410 = vld [vmem:[%s3] sm:$0xf]
        %v1411 = vld [vmem:[%s3 + $0x4] sm:$0xf]
        %v1412 = vld [vmem:[%s3 + $0x8] sm:$0xf]
        %v1413 = vld [vmem:[%s3 + $0xc] sm:$0xf]
        %v1414 = vld [vmem:[#allocation2] sm:$0xff]
        %v1415 = vld [vmem:[#allocation2 + $0x8] sm:$0xff]
        %v1416 = vld [vmem:[#allocation2 + $0x10] sm:$0xff]
        %v1417 = vld [vmem:[#allocation2 + $0x18] sm:$0xff]
        %v1418 = vld [vmem:[#allocation2 + $0x20] sm:$0xff]
        %v1419 = vld [vmem:[#allocation2 + $0x28] sm:$0xff]
        %v1420 = vld [vmem:[#allocation2 + $0x30] sm:$0xff]
        %v1421 = vld [vmem:[#allocation2 + $0x38] sm:$0xff]
        %v1422 = vld [vmem:[#allocation2 + $0x40] sm:$0xff]
        %v1423 = vld [vmem:[#allocation2 + $0x48] sm:$0xff]
        %v1424 = vld [vmem:[#allocation2 + $0x50] sm:$0xff]
        %v1425 = vld [vmem:[#allocation2 + $0x58] sm:$0xff]
        %v1426 = vld [vmem:[#allocation2 + $0x60] sm:$0xff]
        %v1427 = vld [vmem:[#allocation2 + $0x68] sm:$0xff]
        %v1428 = vld [vmem:[#allocation2 + $0x70] sm:$0xff]
        %v1429 = vld [vmem:[#allocation2 + $0x78] sm:$0xff]
        %1431 = vset.pattern.permute.xlu0 0
        %1432 = vperm.xlu0 %1431, %v289
        %v1433 = vpop.permute.xlu0 %1432
        %1436 = vset.pattern.permute.xlu0 0
        %1437 = vperm.xlu0 %1436, %v290
        %v1438 = vpop.permute.xlu0 %1437
        %1441 = vset.pattern.permute.xlu0 0
        %1442 = vperm.xlu0 %1441, %v291
        %v1443 = vpop.permute.xlu0 %1442
        %1446 = vset.pattern.permute.xlu0 0
        %1447 = vperm.xlu0 %1446, %v292
        %v1448 = vpop.permute.xlu0 %1447
        %v1454 = vunpack.c.l.b16 %v1410
        %v1455 = vunpack.c.l.b16 %v1411
        %v1456 = vunpack.c.l.b16 %v1412
        %v1457 = vunpack.c.l.b16 %v1413
        %v1458 = vpack.c.b16 %v1455, %v1454
        %v1459 = vpack.c.b16 %v1457, %v1456
        %v1478 = vunpack.c.l.b16 %v1414
        %v1479 = vunpack.c.h.b16 %v1414
        %v1480 = vunpack.c.l.b16 %v1415
        %v1481 = vunpack.c.h.b16 %v1415
        %v1482 = vunpack.c.l.b16 %v1416
        %v1483 = vunpack.c.h.b16 %v1416
        %v1484 = vunpack.c.l.b16 %v1417
        %v1485 = vunpack.c.h.b16 %v1417
        %v1486 = vunpack.c.l.b16 %v1418
        %v1487 = vunpack.c.h.b16 %v1418
        %v1488 = vunpack.c.l.b16 %v1419
        %v1489 = vunpack.c.h.b16 %v1419
        %v1490 = vunpack.c.l.b16 %v1420
        %v1491 = vunpack.c.h.b16 %v1420
        %v1492 = vunpack.c.l.b16 %v1421
        %v1493 = vunpack.c.h.b16 %v1421
        %v1494 = vunpack.c.l.b16 %v1422
        %v1495 = vunpack.c.h.b16 %v1422
        %v1496 = vunpack.c.l.b16 %v1423
        %v1497 = vunpack.c.h.b16 %v1423
        %v1498 = vunpack.c.l.b16 %v1424
        %v1499 = vunpack.c.h.b16 %v1424
        %v1500 = vunpack.c.l.b16 %v1425
        %v1501 = vunpack.c.h.b16 %v1425
        %v1502 = vunpack.c.l.b16 %v1426
        %v1503 = vunpack.c.h.b16 %v1426
        %v1504 = vunpack.c.l.b16 %v1427
        %v1505 = vunpack.c.h.b16 %v1427
        %v1506 = vunpack.c.l.b16 %v1428
        %v1507 = vunpack.c.h.b16 %v1428
        %v1508 = vunpack.c.l.b16 %v1429
        %v1509 = vunpack.c.h.b16 %v1429
        %v1510 = vpack.c.b16 %v1480, %v1478
        %v1511 = vpack.c.b16 %v1481, %v1479
        %v1512 = vpack.c.b16 %v1484, %v1482
        %v1513 = vpack.c.b16 %v1485, %v1483
        %v1514 = vpack.c.b16 %v1488, %v1486
        %v1515 = vpack.c.b16 %v1489, %v1487
        %v1516 = vpack.c.b16 %v1492, %v1490
        %v1517 = vpack.c.b16 %v1493, %v1491
        %v1518 = vpack.c.b16 %v1496, %v1494
        %v1519 = vpack.c.b16 %v1497, %v1495
        %v1520 = vpack.c.b16 %v1500, %v1498
        %v1521 = vpack.c.b16 %v1501, %v1499
        %v1522 = vpack.c.b16 %v1504, %v1502
        %v1523 = vpack.c.b16 %v1505, %v1503
        %v1524 = vpack.c.b16 %v1508, %v1506
        %v1525 = vpack.c.b16 %v1509, %v1507
        %1542 = vmatprep.subr.bf16.mxu0 %v1525
        %1543 = vmatpush1.bf16.msra.mxu0 %v1524
        %1544 = vmatprep.subr.bf16.mxu0 %v1523
        %1545 = vmatpush1.bf16.msra.mxu0 %v1522
        %1546 = vmatprep.subr.bf16.mxu0 %v1521
        %1547 = vmatpush1.bf16.msra.mxu0 %v1520
        %1548 = vmatprep.subr.bf16.mxu0 %v1519
        %1549 = vmatpush1.bf16.msra.mxu0 %v1518
        %1550 = vmatprep.subr.bf16.mxu0 %v1517
        %1551 = vmatpush1.bf16.msra.mxu0 %v1516
        %1552 = vmatprep.subr.bf16.mxu0 %v1515
        %1553 = vmatpush1.bf16.msra.mxu0 %v1514
        %1554 = vmatprep.subr.bf16.mxu0 %v1513
        %1555 = vmatpush1.bf16.msra.mxu0 %v1512
        %1556 = vmatprep.subr.bf16.mxu0 %v1511
        %1557 = vmatpush1.bf16.msra.mxu0 %v1510
        %1558 = vmatprep.subr.bf16.mxu0 0
        %1559 = vmatpush2.bf16.msra.mxu0 0
        %1560 = vmatprep.subr.bf16.mxu0 0
        %1561 = vmatpush2.bf16.msra.mxu0 0
        %1562 = vmatprep.subr.bf16.mxu0 0
        %1563 = vmatpush2.bf16.msra.mxu0 0
        %1564 = vmatprep.subr.bf16.mxu0 0
        %1565 = vmatpush2.bf16.msra.mxu0 0
        %1566 = vmatprep.subr.bf16.mxu0 0
        %1567 = vmatpush2.bf16.msra.mxu0 0
        %1568 = vmatprep.subr.bf16.mxu0 0
        %1569 = vmatpush2.bf16.msra.mxu0 0
        %1570 = vmatprep.subr.bf16.mxu0 0
        %1571 = vmatpush2.bf16.msra.mxu0 0
        %1572 = vmatprep.subr.bf16.mxu0 0
        %1573 = vmatpush2.bf16.msra.mxu0 0
        %1574 = vmatprep.mubr.bf16.mxu0 0
        %1575 = vmatmul.mubr.bf16.gmra.mxu0 %v1458
        %v1576 = vpop.f32.mrf.mxu0
        %v1577 = vadd.f32 %v1433, %v1576
        %v1578 = vpop.f32.mrf.mxu0
        %v1579 = vadd.f32 %v1433, %v1578
        %v1580 = vpop.f32.mrf.mxu0
        %v1581 = vadd.f32 %v1438, %v1580
        %v1582 = vpop.f32.mrf.mxu0
        %v1583 = vadd.f32 %v1438, %v1582
        %1584 = vmatprep.mubr.bf16.mxu0 0
        %1585 = vmatmul.mubr.bf16.gmra.mxu0 %v1459
        %v1586 = vpop.f32.mrf.mxu0
        %v1587 = vadd.f32 %v1443, %v1586
        %v1588 = vpop.f32.mrf.mxu0
        %v1589 = vadd.f32 %v1443, %v1588
        %v1590 = vpop.f32.mrf.mxu0
        %v1591 = vadd.f32 %v1448, %v1590
        %v1592 = vpop.f32.mrf.mxu0
        %v1593 = vadd.f32 %v1448, %v1592
        %1594 = vdwg.mxu0
        %v1595 = vmax.f32 %v1577, 0.0
        %v1596 = vmax.f32 %v1579, 0.0
        %v1597 = vmax.f32 %v1581, 0.0
        %v1598 = vmax.f32 %v1583, 0.0
        %v1599 = vmax.f32 %v1587, 0.0
        %v1600 = vmax.f32 %v1589, 0.0
        %v1601 = vmax.f32 %v1591, 0.0
        %v1602 = vmax.f32 %v1593, 0.0
        %v1603 = vld [vmem:[%s4] sm:$0xf]
        %v1604 = vld [vmem:[%s4 + $0x4] sm:$0xf]
        %v1605 = vld [vmem:[%s4 + $0x8] sm:$0xf]
        %v1606 = vld [vmem:[%s4 + $0xc] sm:$0xf]
        %v1607 = vld [vmem:[%s4 + $0x10] sm:$0xf]
        %v1608 = vld [vmem:[%s4 + $0x14] sm:$0xf]
        %v1609 = vld [vmem:[%s4 + $0x18] sm:$0xf]
        %v1610 = vld [vmem:[%s4 + $0x1c] sm:$0xf]
        %v1611 = vpack.c.bf16 %v1597, %v1595
        %v1612 = vpack.c.bf16 %v1598, %v1596
        %v1613 = vpack.c.bf16 %v1601, %v1599
        %v1614 = vpack.c.bf16 %v1602, %v1600
        %1616 = vset.pattern.permute.xlu0 0
        %1617 = vperm.xlu0 %1616, %v293
        %v1618 = vpop.permute.xlu0 %1617
        %1621 = vset.pattern.permute.xlu0 0
        %1622 = vperm.xlu0 %1621, %v294
        %v1623 = vpop.permute.xlu0 %1622
        %1626 = vset.pattern.permute.xlu0 0
        %1627 = vperm.xlu0 %1626, %v295
        %v1628 = vpop.permute.xlu0 %1627
        %1631 = vset.pattern.permute.xlu0 0
        %1632 = vperm.xlu0 %1631, %v296
        %v1633 = vpop.permute.xlu0 %1632
        %1636 = vset.pattern.permute.xlu0 0
        %1637 = vperm.xlu0 %1636, %v297
        %v1638 = vpop.permute.xlu0 %1637
        %1641 = vset.pattern.permute.xlu0 0
        %1642 = vperm.xlu0 %1641, %v298
        %v1643 = vpop.permute.xlu0 %1642
        %1646 = vset.pattern.permute.xlu0 0
        %1647 = vperm.xlu0 %1646, %v299
        %v1648 = vpop.permute.xlu0 %1647
        %1651 = vset.pattern.permute.xlu0 0
        %1652 = vperm.xlu0 %1651, %v300
        %v1653 = vpop.permute.xlu0 %1652
        %v1663 = vunpack.c.l.b16 %v1603
        %v1664 = vunpack.c.l.b16 %v1604
        %v1665 = vunpack.c.l.b16 %v1605
        %v1666 = vunpack.c.l.b16 %v1606
        %v1667 = vunpack.c.l.b16 %v1607
        %v1668 = vunpack.c.l.b16 %v1608
        %v1669 = vunpack.c.l.b16 %v1609
        %v1670 = vunpack.c.l.b16 %v1610
        %v1671 = vpack.c.b16 %v1664, %v1663
        %v1672 = vpack.c.b16 %v1666, %v1665
        %v1673 = vpack.c.b16 %v1668, %v1667
        %v1674 = vpack.c.b16 %v1670, %v1669
        %vm1675 = vcmask 261120
        %v1677 = vsel %vm1675, %v1671, 0
        %v1680 = vsel %vm1675, %v1672, 0
        %v1683 = vsel %vm1675, %v1673, 0
        %v1686 = vsel %vm1675, %v1674, 0
        %1688 = vmatprep.subr.bf16.mxu0 0
        %1689 = vmatpush1.bf16.msra.mxu0 0
        %1690 = vmatprep.subr.bf16.mxu0 0
        %1691 = vmatpush1.bf16.msra.mxu0 0
        %1692 = vmatprep.subr.bf16.mxu0 0
        %1693 = vmatpush1.bf16.msra.mxu0 0
        %1694 = vmatprep.subr.bf16.mxu0 0
        %1695 = vmatpush1.bf16.msra.mxu0 0
        %1696 = vmatprep.subr.bf16.mxu0 0
        %1697 = vmatpush1.bf16.msra.mxu0 0
        %1698 = vmatprep.subr.bf16.mxu0 0
        %1699 = vmatpush1.bf16.msra.mxu0 0
        %1700 = vmatprep.subr.bf16.mxu0 %v1614
        %1701 = vmatpush1.bf16.msra.mxu0 %v1613
        %1702 = vmatprep.subr.bf16.mxu0 %v1612
        %1703 = vmatpush1.bf16.msra.mxu0 %v1611
        %1704 = vmatprep.subr.bf16.mxu0 0
        %1705 = vmatpush2.bf16.msra.mxu0 0
        %1706 = vmatprep.subr.bf16.mxu0 0
        %1707 = vmatpush2.bf16.msra.mxu0 0
        %1708 = vmatprep.subr.bf16.mxu0 0
        %1709 = vmatpush2.bf16.msra.mxu0 0
        %1710 = vmatprep.subr.bf16.mxu0 0
        %1711 = vmatpush2.bf16.msra.mxu0 0
        %1712 = vmatprep.subr.bf16.mxu0 0
        %1713 = vmatpush2.bf16.msra.mxu0 0
        %1714 = vmatprep.subr.bf16.mxu0 0
        %1715 = vmatpush2.bf16.msra.mxu0 0
        %1716 = vmatprep.subr.bf16.mxu0 0
        %1717 = vmatpush2.bf16.msra.mxu0 0
        %1718 = vmatprep.subr.bf16.mxu0 0
        %1719 = vmatpush2.bf16.msra.mxu0 0
        %1720 = vmatprep.mubr.bf16.mxu0 0
        %1721 = vmatmul.mubr.bf16.gmra.mxu0 %v1677
        %v1722 = vpop.f32.mrf.mxu0
        %v1723 = vadd.f32 %v1618, %v1722
        %v1724 = vpop.f32.mrf.mxu0
        %v1725 = vadd.f32 %v1618, %v1724
        %v1726 = vpop.f32.mrf.mxu0
        %v1727 = vadd.f32 %v1623, %v1726
        %v1728 = vpop.f32.mrf.mxu0
        %v1729 = vadd.f32 %v1623, %v1728
        %1730 = vmatprep.mubr.bf16.mxu0 0
        %1731 = vmatmul.mubr.bf16.gmra.mxu0 %v1680
        %v1732 = vpop.f32.mrf.mxu0
        %v1733 = vadd.f32 %v1628, %v1732
        %v1734 = vpop.f32.mrf.mxu0
        %v1735 = vadd.f32 %v1628, %v1734
        %v1736 = vpop.f32.mrf.mxu0
        %v1737 = vadd.f32 %v1633, %v1736
        %v1738 = vpop.f32.mrf.mxu0
        %v1739 = vadd.f32 %v1633, %v1738
        %1740 = vmatprep.mubr.bf16.mxu0 0
        %1741 = vmatmul.mubr.bf16.gmra.mxu0 %v1683
        %v1742 = vpop.f32.mrf.mxu0
        %v1743 = vadd.f32 %v1638, %v1742
        %v1744 = vpop.f32.mrf.mxu0
        %v1745 = vadd.f32 %v1638, %v1744
        %v1746 = vpop.f32.mrf.mxu0
        %v1747 = vadd.f32 %v1643, %v1746
        %v1748 = vpop.f32.mrf.mxu0
        %v1749 = vadd.f32 %v1643, %v1748
        %1750 = vmatprep.mubr.bf16.mxu0 0
        %1751 = vmatmul.mubr.bf16.gmra.mxu0 %v1686
        %v1752 = vpop.f32.mrf.mxu0
        %v1753 = vadd.f32 %v1648, %v1752
        %v1754 = vpop.f32.mrf.mxu0
        %v1755 = vadd.f32 %v1648, %v1754
        %v1756 = vpop.f32.mrf.mxu0
        %v1757 = vadd.f32 %v1653, %v1756
        %v1758 = vpop.f32.mrf.mxu0
        %v1759 = vadd.f32 %v1653, %v1758
        %1760 = vdwg.mxu0
        %v1761 = vmax.f32 %v1723, %v1725
        %1762 = vmax.xlane.f32.xlu0 %v1761
        %v1763 = vpop.xlane.xlu0 %1762
        %v1764 = vmax.f32 %v1727, %v1729
        %1765 = vmax.xlane.f32.xlu0 %v1764
        %v1766 = vpop.xlane.xlu0 %1765
        %v1767 = vmax.f32 %v1733, %v1735
        %1768 = vmax.xlane.f32.xlu0 %v1767
        %v1769 = vpop.xlane.xlu0 %1768
        %v1770 = vmax.f32 %v1737, %v1739
        %1771 = vmax.xlane.f32.xlu0 %v1770
        %v1772 = vpop.xlane.xlu0 %1771
        %v1773 = vmax.f32 %v1743, %v1745
        %1774 = vmax.xlane.f32.xlu0 %v1773
        %v1775 = vpop.xlane.xlu0 %1774
        %v1776 = vmax.f32 %v1747, %v1749
        %1777 = vmax.xlane.f32.xlu0 %v1776
        %v1778 = vpop.xlane.xlu0 %1777
        %v1779 = vmax.f32 %v1753, %v1755
        %1780 = vmax.xlane.f32.xlu0 %v1779
        %v1781 = vpop.xlane.xlu0 %1780
        %v1782 = vmax.f32 %v1757, %v1759
        %1783 = vmax.xlane.f32.xlu0 %v1782
        %v1784 = vpop.xlane.xlu0 %1783
        %v1785 = vsub.f32 %v1723, %v1763
        %v1786 = vsub.f32 %v1725, %v1763
        %v1787 = vsub.f32 %v1727, %v1766
        %v1788 = vsub.f32 %v1729, %v1766
        %v1789 = vsub.f32 %v1733, %v1769
        %v1790 = vsub.f32 %v1735, %v1769
        %v1791 = vsub.f32 %v1737, %v1772
        %v1792 = vsub.f32 %v1739, %v1772
        %v1793 = vsub.f32 %v1743, %v1775
        %v1794 = vsub.f32 %v1745, %v1775
        %v1795 = vsub.f32 %v1747, %v1778
        %v1796 = vsub.f32 %v1749, %v1778
        %v1797 = vsub.f32 %v1753, %v1781
        %v1798 = vsub.f32 %v1755, %v1781
        %v1799 = vsub.f32 %v1757, %v1784
        %v1800 = vsub.f32 %v1759, %v1784
        %v1801 = vmul.f32 %v1785, 1.442695
        %v1802 = vpow.pop %v1801
        %v1803 = vmul.f32 %v1786, 1.442695
        %v1804 = vpow.pop %v1803
        %v1805 = vmul.f32 %v1787, 1.442695
        %v1806 = vpow.pop %v1805
        %v1807 = vmul.f32 %v1788, 1.442695
        %v1808 = vpow.pop %v1807
        %v1809 = vmul.f32 %v1789, 1.442695
        %v1810 = vpow.pop %v1809
        %v1811 = vmul.f32 %v1790, 1.442695
        %v1812 = vpow.pop %v1811
        %v1813 = vmul.f32 %v1791, 1.442695
        %v1814 = vpow.pop %v1813
        %v1815 = vmul.f32 %v1792, 1.442695
        %v1816 = vpow.pop %v1815
        %v1817 = vmul.f32 %v1793, 1.442695
        %v1818 = vpow.pop %v1817
        %v1819 = vmul.f32 %v1794, 1.442695
        %v1820 = vpow.pop %v1819
        %v1821 = vmul.f32 %v1795, 1.442695
        %v1822 = vpow.pop %v1821
        %v1823 = vmul.f32 %v1796, 1.442695
        %v1824 = vpow.pop %v1823
        %v1825 = vmul.f32 %v1797, 1.442695
        %v1826 = vpow.pop %v1825
        %v1827 = vmul.f32 %v1798, 1.442695
        %v1828 = vpow.pop %v1827
        %v1829 = vmul.f32 %v1799, 1.442695
        %v1830 = vpow.pop %v1829
        %v1831 = vmul.f32 %v1800, 1.442695
        %v1832 = vpow.pop %v1831
        %v1833 = vadd.f32 %v1802, %v1804
        %1834 = vadd.xlane.f32.xlu0 %v1833
        %v1835 = vpop.xlane.xlu0 %1834
        %v1836 = vadd.f32 %v1806, %v1808
        %1837 = vadd.xlane.f32.xlu0 %v1836
        %v1838 = vpop.xlane.xlu0 %1837
        %v1839 = vadd.f32 %v1810, %v1812
        %1840 = vadd.xlane.f32.xlu0 %v1839
        %v1841 = vpop.xlane.xlu0 %1840
        %v1842 = vadd.f32 %v1814, %v1816
        %1843 = vadd.xlane.f32.xlu0 %v1842
        %v1844 = vpop.xlane.xlu0 %1843
        %v1845 = vadd.f32 %v1818, %v1820
        %1846 = vadd.xlane.f32.xlu0 %v1845
        %v1847 = vpop.xlane.xlu0 %1846
        %v1848 = vadd.f32 %v1822, %v1824
        %1849 = vadd.xlane.f32.xlu0 %v1848
        %v1850 = vpop.xlane.xlu0 %1849
        %v1851 = vadd.f32 %v1826, %v1828
        %1852 = vadd.xlane.f32.xlu0 %v1851
        %v1853 = vpop.xlane.xlu0 %1852
        %v1854 = vadd.f32 %v1830, %v1832
        %1855 = vadd.xlane.f32.xlu0 %v1854
        %v1856 = vpop.xlane.xlu0 %1855
        %v1857 = vrcp.pop %v1835
        %v1858 = vrcp.pop %v1838
        %v1859 = vrcp.pop %v1841
        %v1860 = vrcp.pop %v1844
        %v1861 = vrcp.pop %v1847
        %v1862 = vrcp.pop %v1850
        %v1863 = vrcp.pop %v1853
        %v1864 = vrcp.pop %v1856
        %v1865 = vmul.f32 %v1802, %v1857
        %v1866 = vmul.f32 %v1804, %v1857
        %v1867 = vmul.f32 %v1806, %v1858
        %v1868 = vmul.f32 %v1808, %v1858
        %v1869 = vmul.f32 %v1810, %v1859
        %v1870 = vmul.f32 %v1812, %v1859
        %v1871 = vmul.f32 %v1814, %v1860
        %v1872 = vmul.f32 %v1816, %v1860
        %v1873 = vmul.f32 %v1818, %v1861
        %v1874 = vmul.f32 %v1820, %v1861
        %v1875 = vmul.f32 %v1822, %v1862
        %v1876 = vmul.f32 %v1824, %v1862
        %v1877 = vmul.f32 %v1826, %v1863
        %v1878 = vmul.f32 %v1828, %v1863
        %v1879 = vmul.f32 %v1830, %v1864
        %v1880 = vmul.f32 %v1832, %v1864
        %v1881 = vmul.f32 %v1865, %v1308
        %v1882 = vmul.f32 %v1866, %v1310
        %v1883 = vmul.f32 %v1867, %v1312
        %v1884 = vmul.f32 %v1868, %v1314
        %v1885 = vmul.f32 %v1869, %v1318
        %v1886 = vmul.f32 %v1870, %v1320
        %v1887 = vmul.f32 %v1871, %v1322
        %v1888 = vmul.f32 %v1872, %v1324
        %v1889 = vmul.f32 %v1873, %v1328
        %v1890 = vmul.f32 %v1874, %v1330
        %v1891 = vmul.f32 %v1875, %v1332
        %v1892 = vmul.f32 %v1876, %v1334
        %v1893 = vmul.f32 %v1877, %v1338
        %v1894 = vmul.f32 %v1878, %v1340
        %v1895 = vmul.f32 %v1879, %v1342
        %v1896 = vmul.f32 %v1880, %v1344
        %v1897 = vadd.f32 %v1129, %v1881
        %v1898 = vadd.f32 %v1130, %v1882
        %v1899 = vadd.f32 %v1131, %v1883
        %v1900 = vadd.f32 %v1132, %v1884
        %v1901 = vadd.f32 %v1133, %v1885
        %v1902 = vadd.f32 %v1134, %v1886
        %v1903 = vadd.f32 %v1135, %v1887
        %v1904 = vadd.f32 %v1136, %v1888
        %v1905 = vadd.f32 %v1137, %v1889
        %v1906 = vadd.f32 %v1138, %v1890
        %v1907 = vadd.f32 %v1139, %v1891
        %v1908 = vadd.f32 %v1140, %v1892
        %v1909 = vadd.f32 %v1141, %v1893
        %v1910 = vadd.f32 %v1142, %v1894
        %v1911 = vadd.f32 %v1143, %v1895
        %v1912 = vadd.f32 %v1144, %v1896
        %1913 = vst [vmem:[%s269] sm:$0xff] %v1897
        %1914 = vst [vmem:[%s269 + $0x8] sm:$0xff] %v1898
        %1915 = vst [vmem:[%s269 + $0x10] sm:$0xff] %v1899
        %1916 = vst [vmem:[%s269 + $0x18] sm:$0xff] %v1900
        %1917 = vst [vmem:[%s269 + $0x20] sm:$0xff] %v1901
        %1918 = vst [vmem:[%s269 + $0x28] sm:$0xff] %v1902
        %1919 = vst [vmem:[%s269 + $0x30] sm:$0xff] %v1903
        %1920 = vst [vmem:[%s269 + $0x38] sm:$0xff] %v1904
        %1921 = vst [vmem:[%s269 + $0x40] sm:$0xff] %v1905
        %1922 = vst [vmem:[%s269 + $0x48] sm:$0xff] %v1906
        %1923 = vst [vmem:[%s269 + $0x50] sm:$0xff] %v1907
        %1924 = vst [vmem:[%s269 + $0x58] sm:$0xff] %v1908
        %1925 = vst [vmem:[%s269 + $0x60] sm:$0xff] %v1909
        %1926 = vst [vmem:[%s269 + $0x68] sm:$0xff] %v1910
        %1927 = vst [vmem:[%s269 + $0x70] sm:$0xff] %v1911
        %1928 = vst [vmem:[%s269 + $0x78] sm:$0xff] %v1912
        %s1929 = sand.u32 %s162, 1
        %s1930 = scalar_lea.sflag [#allocation5], %s1929
        %s1931 = sand.u32 %s162, 1
        %s1932 = smul.addr %s1931, 128
        %s1933 = scalar_lea.vmem [#allocation6], %s1932
        // Predicated region
        $region49: #{tpu_custom_call.1} parent=43 // pred_check
          %p1934 = pneg %p172
        $region50: #{tpu_custom_call.1} parent=43 // pred_check_branch
          %1936 = sbr.rel (%p1934) target = $region52
        $region51: #{tpu_custom_call.1} parent=43 // pred_region
          %s1937 = smul.u32 2, %s23
          %s1939 = ssub.s32 2048, 2048
          %1940 = vsyncadd %s1930, %s1939
          %s1941 = smul.addr %s1937, 128
          %s1942 = scalar_lea.hbm %s6, %s1941
          %s1943 = sshll.u32 %s1933, 4
          %s1944 = int_to_ptr.vmem [resolvable:$true] %s1943
          %1949 = dma.vmem_to_hbm [thread:$0]  %s1944, 2048, %s1942, %s1930, 256, 512, 16
        $region52: #{tpu_custom_call.1} parent=43 // pred_fallthru
          _
      $region44: #{tpu_custom_call.1} parent=5 // pred_fallthru
        _
      %p1950 = scmp.le.s32.totalorder 2, %s18
      // Predicated region
      $region53: #{tpu_custom_call.1} parent=5 // pred_check
        %p1951 = pneg %p1950
      $region54: #{tpu_custom_call.1} parent=5 // pred_check_branch
        %1953 = sbr.rel (%p1951) target = $region56
      $region55: #{tpu_custom_call.1} parent=5 // pred_region
        %s1954 = ssub.s32 %s18, 2
        // Predicated region
        $region57: #{tpu_custom_call.1} parent=55 // pred_check
          %p1955 = pneg %p178
        $region58: #{tpu_custom_call.1} parent=55 // pred_check_branch
          %1957 = sbr.rel (%p1955) target = $region60
        $region59: #{tpu_custom_call.1} parent=55 // pred_region
          %s1958 = sand.u32 %s163, 1
          %s1959 = scalar_lea.sflag [#allocation5], %s1958
          %s1960 = sand.u32 %s163, 1
          %s1961 = smul.addr %s1960, 128
          %s1962 = scalar_lea.vmem [#allocation6], %s1961
          %1963 = dma.done %s1959, 2048
        $region60: #{tpu_custom_call.1} parent=55 // pred_fallthru
          _
      $region56: #{tpu_custom_call.1} parent=5 // pred_fallthru
        _
    $region6: #{tpu_custom_call.1} parent=1 // loop_footer
      %s22 = sadd.s32 1, %s18
    $region7: #{tpu_custom_call.1} parent=1 // loop_footer_branch
      %17 = sbr.rel target = $region3
    $region8: #{tpu_custom_call.1} parent=1 // loop_exit
      _
    %1964 = vsyncpa [#allocation4], 1
    %s1965 = scalar_lea.sflag [#allocation4], 1
    %1966 = vsyncpa %s1965, 1
    %1967 = vsyncpa [#allocation5], 1
    %s1968 = scalar_lea.sflag [#allocation5], 1
    %1969 = vsyncpa %s1968, 1

</llo_original>
